<compile_context>
chip_gen: v6e
topology: v6e:2x2x1
jax: 0.10.0
libtpu: 0.0.40
codegen_flags: <defaults>
</compile_context>

<pallas_src>
import functools

import jax
import jax.numpy as jnp
from jax import lax
from jax.experimental import pallas as pl
from jax.experimental.pallas import tpu as pltpu


def _round_up(n, m):
    return ((n + m - 1) // m) * m


def flow_head_kernel(x_ref, mask_ref, w1_ref, b1_ref, w2_ref, b2_ref,
                     out_ref, patch_ref, *, W):
    """Fused conv3x3 -> ReLU -> conv3x3 for one grid step.

    x_ref    : (1, Cin_p, N)    input in MXU dtype, channels on sublanes, pixels on lanes
    mask_ref : (9, N)           per-tap 0/1 border-validity masks (MXU dtype), hoisted
    w1_ref   : (Ch_p, 9*Cin_p)  conv1 weights, tap-major columns (t*Cin_p + c)
    b1_ref   : (Ch_p, 1)        conv1 bias (f32)
    w2_ref   : (9, 8, Ch_p)     conv2 weights per tap (output channels padded to 8)
    b2_ref   : (8, 1)           conv2 bias (f32, padded)
    out_ref  : (1, Cout, N)     lane-dense NCHW output
    patch_ref: (9*Cin_p, N)     VMEM scratch for the conv1 im2col patch (MXU dtype)
    """
    N = x_ref.shape[2]
    Cin_p = x_ref.shape[1]
    Cout = out_ref.shape[1]
    offsets = [(dy, dx) for dy in (-1, 0, 1) for dx in (-1, 0, 1)]
    shifts = [(-(dy * W + dx)) % N for dy, dx in offsets]

    x = x_ref[0]                                            # (Cin_p, N), MXU dtype

    # ---- conv1 im2col: stream masked+shifted tap slabs into VMEM scratch ----
    for t, shift in enumerate(shifts):
        shifted = pltpu.roll(x, shift=shift, axis=1) if shift else x
        patch_ref[pl.ds(t * Cin_p, Cin_p), :] = shifted * mask_ref[pl.ds(t, 1), :]

    # One MXU matmul over the folded tap*channel contraction dim; f32 epilogue.
    acc1 = jnp.dot(w1_ref[...], patch_ref[...],
                   preferred_element_type=jnp.float32)      # (Ch_p, N)
    hidden = jnp.maximum(acc1 + b1_ref[...], 0.0)           # f32 bias + ReLU (VPU)
    hidden_m = hidden.astype(patch_ref.dtype)               # single cast to MXU dtype

    # ---- conv2: shift/mask the small per-tap partial OUTPUT (no im2col) ----
    acc2 = jnp.broadcast_to(b2_ref[...], (b2_ref.shape[0], N))   # (8, N) f32
    for t, shift in enumerate(shifts):
        part = jnp.dot(w2_ref[t], hidden_m,
                       preferred_element_type=jnp.float32)  # (8, N) f32
        shifted = pltpu.roll(part, shift=shift, axis=1) if shift else part
        acc2 = acc2 + mask_ref[pl.ds(t, 1), :] * shifted

    out_ref[0] = acc2[:Cout].astype(out_ref.dtype)


def _default_fold_batch():
    """Fold batch onto the lane axis on single-TensorCore chips (v5e/v6e)."""
    try:
        kind = jax.devices()[0].device_kind.lower()
    except Exception:
        return False
    return any(s in kind for s in
               ("v5e", "v5 lite", "v5lite", "v6e", "v6 lite", "v6lite"))


@functools.partial(jax.jit, static_argnames=("mxu_dtype", "fold_batch"))
def _flow_head_impl(x_nchw, w1, b1, w2, b2, *, mxu_dtype, fold_batch):
    B, Cin, H, W = x_nchw.shape
    Ch, Cout = w1.shape[0], w2.shape[0]
    HW = H * W
    # bf16 operands pack 16 rows per sublane tile -> pad channels to 16, else 8.
    cpad = 16 if jnp.dtype(mxu_dtype).itemsize < 4 else 8
    Cin_p = _round_up(Cin, cpad)
    Ch_p = _round_up(Ch, cpad)
    Cout_p = 8                                           # per-tap conv2 output rows

    # Input: (B, Cin, H, W) -> channel-padded, MXU-dtype, lane-dense pixel slab.
    x2 = x_nchw.reshape(B, Cin, HW)
    if Cin_p != Cin:
        x2 = jnp.pad(x2, ((0, 0), (0, Cin_p - Cin), (0, 0)))
    x2 = x2.astype(mxu_dtype)

    if fold_batch:
        # Single-TC chips: one grid step, batch folded onto the lane axis.
        Beff, Neff = 1, B * HW
        x2 = jnp.transpose(x2, (1, 0, 2)).reshape(1, Cin_p, Neff)
    else:
        # Dual-TC chips (v7x): one batch element per TensorCore.
        Beff, Neff = B, HW

    # Border-validity masks for the 9 taps, precomputed once (hoisted).
    pix = jnp.arange(HW, dtype=jnp.int32)
    row, col = pix // W, pix % W
    masks = []
    for dy in (-1, 0, 1):
        for dx in (-1, 0, 1):
            masks.append((row + dy >= 0) & (row + dy < H) &
                         (col + dx >= 0) & (col + dx < W))
    mask = jnp.stack(masks, axis=0).astype(mxu_dtype)        # (9, HW) 0/1
    if fold_batch and B > 1:
        mask = jnp.tile(mask, (1, B))                        # (9, B*HW)

    # conv1 weights: (Ch, Cin, 3, 3) -> tap-major (Ch_p, 9*Cin_p) slab.
    w1_t = jnp.transpose(w1, (0, 2, 3, 1))                   # (Ch, 3, 3, Cin)
    w1_t = jnp.pad(w1_t, ((0, Ch_p - Ch), (0, 0), (0, 0), (0, Cin_p - Cin)))
    w1_t = w1_t.reshape(Ch_p, 9 * Cin_p).astype(mxu_dtype)
    b1_t = jnp.pad(b1, (0, Ch_p - Ch)).reshape(Ch_p, 1).astype(jnp.float32)

    # conv2 weights: (Cout, Ch, 3, 3) -> per-tap (9, Cout_p, Ch_p) slabs.
    w2_t = jnp.transpose(w2, (2, 3, 0, 1))                   # (3, 3, Cout, Ch)
    w2_t = jnp.pad(w2_t, ((0, 0), (0, 0), (0, Cout_p - Cout), (0, Ch_p - Ch)))
    w2_t = w2_t.reshape(9, Cout_p, Ch_p).astype(mxu_dtype)
    b2_t = jnp.pad(b2, (0, Cout_p - Cout)).reshape(Cout_p, 1).astype(jnp.float32)

    kernel = functools.partial(flow_head_kernel, W=W)

    out = pl.pallas_call(
        kernel,
        out_shape=jax.ShapeDtypeStruct((Beff, Cout, Neff), x_nchw.dtype),
        grid_spec=pltpu.PrefetchScalarGridSpec(
            num_scalar_prefetch=0,
            grid=(Beff,),
            in_specs=[
                pl.BlockSpec((1, Cin_p, Neff), lambda b: (b, 0, 0)),
                pl.BlockSpec((9, Neff), lambda b: (0, 0)),
                pl.BlockSpec((Ch_p, 9 * Cin_p), lambda b: (0, 0)),
                pl.BlockSpec((Ch_p, 1), lambda b: (0, 0)),
                pl.BlockSpec((9, Cout_p, Ch_p), lambda b: (0, 0, 0)),
                pl.BlockSpec((Cout_p, 1), lambda b: (0, 0)),
            ],
            out_specs=pl.BlockSpec((1, Cout, Neff), lambda b: (b, 0, 0)),
            scratch_shapes=[pltpu.VMEM((9 * Cin_p, Neff), mxu_dtype)],
        ),
        compiler_params=pltpu.CompilerParams(
            dimension_semantics=("parallel",)),
    )(x2, mask, w1_t, b1_t, w2_t, b2_t)

    if fold_batch:
        out = out.reshape(Cout, B, HW).transpose(1, 0, 2)    # lanes -> (B, Cout, HW)
    return out.reshape(B, Cout, H, W)


def flow_head_forward(x_nchw, w1, b1, w2, b2, *, mxu_dtype=jnp.float32,
                      fold_batch=None):
    """PyTorch-equivalent FlowHead forward. x_nchw: (B,Cin,H,W) -> (B,2,H,W)."""
    if fold_batch is None:
        fold_batch = _default_fold_batch()
    return _flow_head_impl(x_nchw, w1, b1, w2, b2,
                           mxu_dtype=mxu_dtype, fold_batch=bool(fold_batch))


def _reference_forward(x, w1, b1, w2, b2):
    """Pure-JAX reference (lax conv, NCHW/OIHW), mirrors the PyTorch forward."""
    dn = ("NCHW", "OIHW", "NCHW")
    y = lax.conv_general_dilated(x, w1, (1, 1), ((1, 1), (1, 1)),
                                 dimension_numbers=dn)
    y = jnp.maximum(y + b1[None, :, None, None], 0.0)
    z = lax.conv_general_dilated(y, w2, (1, 1), ((1, 1), (1, 1)),
                                 dimension_numbers=dn)
    return z + b2[None, :, None, None]


if __name__ == "__main__":
    # Consistent with FlowHead(inchannel=4, hidden_channel=32)
    B, Cin, H, W = 2, 4, 16, 16
    Ch, Cout = 32, 2

    key = jax.random.PRNGKey(0)
    kx, kw1, kb1, kw2, kb2 = jax.random.split(key, 5)

    x = jax.random.normal(kx, (B, Cin, H, W), dtype=jnp.float32)
    w1 = jax.random.normal(kw1, (Ch, Cin, 3, 3), dtype=jnp.float32) * 0.1
    b1 = jax.random.normal(kb1, (Ch,), dtype=jnp.float32) * 0.1
    w2 = jax.random.normal(kw2, (Cout, Ch, 3, 3), dtype=jnp.float32) * 0.1
    b2 = jax.random.normal(kb2, (Cout,), dtype=jnp.float32) * 0.1

    ref = _reference_forward(x, w1, b1, w2, b2)

    # f32 MXU-operand path, device-default grid layout.
    flow = jax.block_until_ready(flow_head_forward(x, w1, b1, w2, b2))
    assert flow.shape == (B, Cout, H, W), flow.shape
    err = float(jnp.max(jnp.abs(flow - ref)))
    assert jnp.allclose(flow, ref, atol=2e-3, rtol=2e-3), err

    # Explicitly exercise both grid layouts (batch-folded single-step path for
    # single-TC chips and batch-parallel path for dual-TC v7x) so correctness
    # holds regardless of which device this runs on.
    flow_fold = jax.block_until_ready(
        flow_head_forward(x, w1, b1, w2, b2, fold_batch=True))
    err_fold = float(jnp.max(jnp.abs(flow_fold - ref)))
    assert jnp.allclose(flow_fold, ref, atol=2e-3, rtol=2e-3), err_fold

    flow_par = jax.block_until_ready(
        flow_head_forward(x, w1, b1, w2, b2, fold_batch=False))
    err_par = float(jnp.max(jnp.abs(flow_par - ref)))
    assert jnp.allclose(flow_par, ref, atol=2e-3, rtol=2e-3), err_par

    # bf16 MXU-operand fast path (valid on v5e/v6e/v7x); bias/ReLU/accum stay f32.
    flow_bf16 = jax.block_until_ready(
        flow_head_forward(x, w1, b1, w2, b2, mxu_dtype=jnp.bfloat16))
    err_bf16 = float(jnp.max(jnp.abs(flow_bf16 - ref)))
    assert jnp.allclose(flow_bf16, ref, atol=0.5, rtol=0.1), err_bf16

    print("KERNEL_OK")
</pallas_src>

<mosaic_0001>
module attributes {stable_mosaic.version = 11 : i64} {
  func.func @flow_head_kernel(%arg0: i32, %arg1: memref<1x8x256xf32, #tpu.memory_space<vmem>>, %arg2: memref<9x256xf32, #tpu.memory_space<vmem>>, %arg3: memref<32x72xf32, #tpu.memory_space<vmem>>, %arg4: memref<32x1xf32, #tpu.memory_space<vmem>>, %arg5: memref<9x8x32xf32, #tpu.memory_space<vmem>>, %arg6: memref<8x1xf32, #tpu.memory_space<vmem>>, %arg7: memref<1x2x256xf32, #tpu.memory_space<vmem>>, %arg8: memref<72x256xf32, #tpu.memory_space<vmem>>) attributes {dimension_semantics = [#tpu.dimension_semantics<parallel>], iteration_bounds = array<i64: 2>, scalar_prefetch = 0 : i64, scratch_operands = 1 : i64, tpu.core_type = #tpu.core_type<tc>, window_params = [{transform_indices = @transform_0, window_bounds = array<i64: 1, 8, 256>}, {pipeline_mode = #tpu.pipeline_mode<synchronous>, transform_indices = @transform_1, window_bounds = array<i64: 9, 256>}, {pipeline_mode = #tpu.pipeline_mode<synchronous>, transform_indices = @transform_2, window_bounds = array<i64: 32, 72>}, {pipeline_mode = #tpu.pipeline_mode<synchronous>, transform_indices = @transform_3, window_bounds = array<i64: 32, 1>}, {pipeline_mode = #tpu.pipeline_mode<synchronous>, transform_indices = @transform_4, window_bounds = array<i64: 9, 8, 32>}, {pipeline_mode = #tpu.pipeline_mode<synchronous>, transform_indices = @transform_5, window_bounds = array<i64: 8, 1>}, {transform_indices = @transform_6, window_bounds = array<i64: 1, 2, 256>}]} {
    %c0 = arith.constant 0 : index
    %c0_0 = arith.constant 0 : index
    %c0_1 = arith.constant 0 : index
    %0 = vector.load %arg1[%c0, %c0_0, %c0_1] : memref<1x8x256xf32, #tpu.memory_space<vmem>>, vector<1x8x256xf32>
    %1 = vector.shape_cast %0 : vector<1x8x256xf32> to vector<8x256xf32>
    %c17_i32 = arith.constant 17 : i32
    %2 = tpu.dynamic_rotate %1 by %c17_i32 dim 1 : vector<8x256xf32>, i32 -> vector<8x256xf32>
    %c0_2 = arith.constant 0 : index
    %c0_3 = arith.constant 0 : index
    %3 = vector.load %arg2[%c0_2, %c0_3] : memref<9x256xf32, #tpu.memory_space<vmem>>, vector<1x256xf32>
    %4 = vector.broadcast %3 : vector<1x256xf32> to vector<8x256xf32>
    %5 = arith.mulf %2, %4 : vector<8x256xf32>
    %c0_4 = arith.constant 0 : index
    %c0_5 = arith.constant 0 : index
    %6 = vector.load %arg8[%c0_4, %c0_5] : memref<72x256xf32, #tpu.memory_space<vmem>>, vector<8x256xf32>
    tpu.vector_store %arg8[%c0_4, %c0_5], %5 {strides = array<i32>} : memref<72x256xf32, #tpu.memory_space<vmem>>, vector<8x256xf32>,
    %c16_i32 = arith.constant 16 : i32
    %7 = tpu.dynamic_rotate %1 by %c16_i32 dim 1 : vector<8x256xf32>, i32 -> vector<8x256xf32>
    %c1 = arith.constant 1 : index
    %c0_6 = arith.constant 0 : index
    %8 = vector.load %arg2[%c1, %c0_6] : memref<9x256xf32, #tpu.memory_space<vmem>>, vector<1x256xf32>
    %9 = vector.broadcast %8 : vector<1x256xf32> to vector<8x256xf32>
    %10 = arith.mulf %7, %9 : vector<8x256xf32>
    %c8 = arith.constant 8 : index
    %c0_7 = arith.constant 0 : index
    %11 = vector.load %arg8[%c8, %c0_7] : memref<72x256xf32, #tpu.memory_space<vmem>>, vector<8x256xf32>
    tpu.vector_store %arg8[%c8, %c0_7], %10 {strides = array<i32>} : memref<72x256xf32, #tpu.memory_space<vmem>>, vector<8x256xf32>,
    %c15_i32 = arith.constant 15 : i32
    %12 = tpu.dynamic_rotate %1 by %c15_i32 dim 1 : vector<8x256xf32>, i32 -> vector<8x256xf32>
    %c2 = arith.constant 2 : index
    %c0_8 = arith.constant 0 : index
    %13 = vector.load %arg2[%c2, %c0_8] : memref<9x256xf32, #tpu.memory_space<vmem>>, vector<1x256xf32>
    %14 = vector.broadcast %13 : vector<1x256xf32> to vector<8x256xf32>
    %15 = arith.mulf %12, %14 : vector<8x256xf32>
    %c16 = arith.constant 16 : index
    %c0_9 = arith.constant 0 : index
    %16 = vector.load %arg8[%c16, %c0_9] : memref<72x256xf32, #tpu.memory_space<vmem>>, vector<8x256xf32>
    tpu.vector_store %arg8[%c16, %c0_9], %15 {strides = array<i32>} : memref<72x256xf32, #tpu.memory_space<vmem>>, vector<8x256xf32>,
    %c1_i32 = arith.constant 1 : i32
    %17 = tpu.dynamic_rotate %1 by %c1_i32 dim 1 : vector<8x256xf32>, i32 -> vector<8x256xf32>
    %c3 = arith.constant 3 : index
    %c0_10 = arith.constant 0 : index
    %18 = vector.load %arg2[%c3, %c0_10] : memref<9x256xf32, #tpu.memory_space<vmem>>, vector<1x256xf32>
    %19 = vector.broadcast %18 : vector<1x256xf32> to vector<8x256xf32>
    %20 = arith.mulf %17, %19 : vector<8x256xf32>
    %c24 = arith.constant 24 : index
    %c0_11 = arith.constant 0 : index
    %21 = vector.load %arg8[%c24, %c0_11] : memref<72x256xf32, #tpu.memory_space<vmem>>, vector<8x256xf32>
    tpu.vector_store %arg8[%c24, %c0_11], %20 {strides = array<i32>} : memref<72x256xf32, #tpu.memory_space<vmem>>, vector<8x256xf32>,
    %c4 = arith.constant 4 : index
    %c0_12 = arith.constant 0 : index
    %22 = vector.load %arg2[%c4, %c0_12] : memref<9x256xf32, #tpu.memory_space<vmem>>, vector<1x256xf32>
    %23 = vector.broadcast %22 : vector<1x256xf32> to vector<8x256xf32>
    %24 = arith.mulf %1, %23 : vector<8x256xf32>
    %c32 = arith.constant 32 : index
    %c0_13 = arith.constant 0 : index
    %25 = vector.load %arg8[%c32, %c0_13] : memref<72x256xf32, #tpu.memory_space<vmem>>, vector<8x256xf32>
    tpu.vector_store %arg8[%c32, %c0_13], %24 {strides = array<i32>} : memref<72x256xf32, #tpu.memory_space<vmem>>, vector<8x256xf32>,
    %c255_i32 = arith.constant 255 : i32
    %26 = tpu.dynamic_rotate %1 by %c255_i32 dim 1 : vector<8x256xf32>, i32 -> vector<8x256xf32>
    %c5 = arith.constant 5 : index
    %c0_14 = arith.constant 0 : index
    %27 = vector.load %arg2[%c5, %c0_14] : memref<9x256xf32, #tpu.memory_space<vmem>>, vector<1x256xf32>
    %28 = vector.broadcast %27 : vector<1x256xf32> to vector<8x256xf32>
    %29 = arith.mulf %26, %28 : vector<8x256xf32>
    %c40 = arith.constant 40 : index
    %c0_15 = arith.constant 0 : index
    %30 = vector.load %arg8[%c40, %c0_15] : memref<72x256xf32, #tpu.memory_space<vmem>>, vector<8x256xf32>
    tpu.vector_store %arg8[%c40, %c0_15], %29 {strides = array<i32>} : memref<72x256xf32, #tpu.memory_space<vmem>>, vector<8x256xf32>,
    %c241_i32 = arith.constant 241 : i32
    %31 = tpu.dynamic_rotate %1 by %c241_i32 dim 1 : vector<8x256xf32>, i32 -> vector<8x256xf32>
    %c6 = arith.constant 6 : index
    %c0_16 = arith.constant 0 : index
    %32 = vector.load %arg2[%c6, %c0_16] : memref<9x256xf32, #tpu.memory_space<vmem>>, vector<1x256xf32>
    %33 = vector.broadcast %32 : vector<1x256xf32> to vector<8x256xf32>
    %34 = arith.mulf %31, %33 : vector<8x256xf32>
    %c48 = arith.constant 48 : index
    %c0_17 = arith.constant 0 : index
    %35 = vector.load %arg8[%c48, %c0_17] : memref<72x256xf32, #tpu.memory_space<vmem>>, vector<8x256xf32>
    tpu.vector_store %arg8[%c48, %c0_17], %34 {strides = array<i32>} : memref<72x256xf32, #tpu.memory_space<vmem>>, vector<8x256xf32>,
    %c240_i32 = arith.constant 240 : i32
    %36 = tpu.dynamic_rotate %1 by %c240_i32 dim 1 : vector<8x256xf32>, i32 -> vector<8x256xf32>
    %c7 = arith.constant 7 : index
    %c0_18 = arith.constant 0 : index
    %37 = vector.load %arg2[%c7, %c0_18] : memref<9x256xf32, #tpu.memory_space<vmem>>, vector<1x256xf32>
    %38 = vector.broadcast %37 : vector<1x256xf32> to vector<8x256xf32>
    %39 = arith.mulf %36, %38 : vector<8x256xf32>
    %c56 = arith.constant 56 : index
    %c0_19 = arith.constant 0 : index
    %40 = vector.load %arg8[%c56, %c0_19] : memref<72x256xf32, #tpu.memory_space<vmem>>, vector<8x256xf32>
    tpu.vector_store %arg8[%c56, %c0_19], %39 {strides = array<i32>} : memref<72x256xf32, #tpu.memory_space<vmem>>, vector<8x256xf32>,
    %c239_i32 = arith.constant 239 : i32
    %41 = tpu.dynamic_rotate %1 by %c239_i32 dim 1 : vector<8x256xf32>, i32 -> vector<8x256xf32>
    %c8_20 = arith.constant 8 : index
    %c0_21 = arith.constant 0 : index
    %42 = vector.load %arg2[%c8_20, %c0_21] : memref<9x256xf32, #tpu.memory_space<vmem>>, vector<1x256xf32>
    %43 = vector.broadcast %42 : vector<1x256xf32> to vector<8x256xf32>
    %44 = arith.mulf %41, %43 : vector<8x256xf32>
    %c64 = arith.constant 64 : index
    %c0_22 = arith.constant 0 : index
    %45 = vector.load %arg8[%c64, %c0_22] : memref<72x256xf32, #tpu.memory_space<vmem>>, vector<8x256xf32>
    tpu.vector_store %arg8[%c64, %c0_22], %44 {strides = array<i32>} : memref<72x256xf32, #tpu.memory_space<vmem>>, vector<8x256xf32>,
    %c0_23 = arith.constant 0 : index
    %c0_24 = arith.constant 0 : index
    %46 = vector.load %arg3[%c0_23, %c0_24] : memref<32x72xf32, #tpu.memory_space<vmem>>, vector<32x72xf32>
    %c0_25 = arith.constant 0 : index
    %c0_26 = arith.constant 0 : index
    %47 = vector.load %arg8[%c0_25, %c0_26] : memref<72x256xf32, #tpu.memory_space<vmem>>, vector<72x256xf32>
    %cst = arith.constant dense<0.000000e+00> : vector<32x256xf32>
    %48 = tpu.matmul %46, %47, %cst {dimension_numbers = #tpu.dot_dimension_numbers<[1], [0], [0], [1], [0, 0, 1, 1], [], []>} : vector<32x72xf32>, vector<72x256xf32>, vector<32x256xf32> -> vector<32x256xf32>
    %c0_27 = arith.constant 0 : index
    %c0_28 = arith.constant 0 : index
    %49 = vector.load %arg4[%c0_27, %c0_28] : memref<32x1xf32, #tpu.memory_space<vmem>>, vector<32x1xf32>
    %50 = vector.broadcast %49 : vector<32x1xf32> to vector<32x256xf32>
    %51 = arith.addf %48, %50 : vector<32x256xf32>
    %cst_29 = arith.constant 0.000000e+00 : f32
    %52 = vector.broadcast %cst_29 : f32 to vector<32x256xf32>
    %53 = arith.maximumf %51, %52 : vector<32x256xf32>
    %c0_30 = arith.constant 0 : index
    %c0_31 = arith.constant 0 : index
    %54 = vector.load %arg6[%c0_30, %c0_31] : memref<8x1xf32, #tpu.memory_space<vmem>>, vector<8x1xf32>
    %55 = vector.shape_cast %54 : vector<8x1xf32> to vector<8x1xf32>
    %56 = vector.broadcast %55 : vector<8x1xf32> to vector<8x256xf32>
    %c0_32 = arith.constant 0 : index
    %c0_33 = arith.constant 0 : index
    %c0_34 = arith.constant 0 : index
    %57 = vector.load %arg5[%c0_32, %c0_33, %c0_34] : memref<9x8x32xf32, #tpu.memory_space<vmem>>, vector<1x8x32xf32>
    %58 = vector.shape_cast %57 : vector<1x8x32xf32> to vector<8x32xf32>
    %cst_35 = arith.constant dense<0.000000e+00> : vector<8x256xf32>
    %59 = tpu.matmul %58, %53, %cst_35 {dimension_numbers = #tpu.dot_dimension_numbers<[1], [0], [0], [1], [0, 0, 1, 1], [], []>} : vector<8x32xf32>, vector<32x256xf32>, vector<8x256xf32> -> vector<8x256xf32>
    %c17_i32_36 = arith.constant 17 : i32
    %60 = tpu.dynamic_rotate %59 by %c17_i32_36 dim 1 : vector<8x256xf32>, i32 -> vector<8x256xf32>
    %c0_37 = arith.constant 0 : index
    %c0_38 = arith.constant 0 : index
    %61 = vector.load %arg2[%c0_37, %c0_38] : memref<9x256xf32, #tpu.memory_space<vmem>>, vector<1x256xf32>
    %62 = vector.broadcast %61 : vector<1x256xf32> to vector<8x256xf32>
    %63 = arith.mulf %62, %60 : vector<8x256xf32>
    %64 = arith.addf %56, %63 : vector<8x256xf32>
    %c1_39 = arith.constant 1 : index
    %c0_40 = arith.constant 0 : index
    %c0_41 = arith.constant 0 : index
    %65 = vector.load %arg5[%c1_39, %c0_40, %c0_41] : memref<9x8x32xf32, #tpu.memory_space<vmem>>, vector<1x8x32xf32>
    %66 = vector.shape_cast %65 : vector<1x8x32xf32> to vector<8x32xf32>
    %cst_42 = arith.constant dense<0.000000e+00> : vector<8x256xf32>
    %67 = tpu.matmul %66, %53, %cst_42 {dimension_numbers = #tpu.dot_dimension_numbers<[1], [0], [0], [1], [0, 0, 1, 1], [], []>} : vector<8x32xf32>, vector<32x256xf32>, vector<8x256xf32> -> vector<8x256xf32>
    %c16_i32_43 = arith.constant 16 : i32
    %68 = tpu.dynamic_rotate %67 by %c16_i32_43 dim 1 : vector<8x256xf32>, i32 -> vector<8x256xf32>
    %c1_44 = arith.constant 1 : index
    %c0_45 = arith.constant 0 : index
    %69 = vector.load %arg2[%c1_44, %c0_45] : memref<9x256xf32, #tpu.memory_space<vmem>>, vector<1x256xf32>
    %70 = vector.broadcast %69 : vector<1x256xf32> to vector<8x256xf32>
    %71 = arith.mulf %70, %68 : vector<8x256xf32>
    %72 = arith.addf %64, %71 : vector<8x256xf32>
    %c2_46 = arith.constant 2 : index
    %c0_47 = arith.constant 0 : index
    %c0_48 = arith.constant 0 : index
    %73 = vector.load %arg5[%c2_46, %c0_47, %c0_48] : memref<9x8x32xf32, #tpu.memory_space<vmem>>, vector<1x8x32xf32>
    %74 = vector.shape_cast %73 : vector<1x8x32xf32> to vector<8x32xf32>
    %cst_49 = arith.constant dense<0.000000e+00> : vector<8x256xf32>
    %75 = tpu.matmul %74, %53, %cst_49 {dimension_numbers = #tpu.dot_dimension_numbers<[1], [0], [0], [1], [0, 0, 1, 1], [], []>} : vector<8x32xf32>, vector<32x256xf32>, vector<8x256xf32> -> vector<8x256xf32>
    %c15_i32_50 = arith.constant 15 : i32
    %76 = tpu.dynamic_rotate %75 by %c15_i32_50 dim 1 : vector<8x256xf32>, i32 -> vector<8x256xf32>
    %c2_51 = arith.constant 2 : index
    %c0_52 = arith.constant 0 : index
    %77 = vector.load %arg2[%c2_51, %c0_52] : memref<9x256xf32, #tpu.memory_space<vmem>>, vector<1x256xf32>
    %78 = vector.broadcast %77 : vector<1x256xf32> to vector<8x256xf32>
    %79 = arith.mulf %78, %76 : vector<8x256xf32>
    %80 = arith.addf %72, %79 : vector<8x256xf32>
    %c3_53 = arith.constant 3 : index
    %c0_54 = arith.constant 0 : index
    %c0_55 = arith.constant 0 : index
    %81 = vector.load %arg5[%c3_53, %c0_54, %c0_55] : memref<9x8x32xf32, #tpu.memory_space<vmem>>, vector<1x8x32xf32>
    %82 = vector.shape_cast %81 : vector<1x8x32xf32> to vector<8x32xf32>
    %cst_56 = arith.constant dense<0.000000e+00> : vector<8x256xf32>
    %83 = tpu.matmul %82, %53, %cst_56 {dimension_numbers = #tpu.dot_dimension_numbers<[1], [0], [0], [1], [0, 0, 1, 1], [], []>} : vector<8x32xf32>, vector<32x256xf32>, vector<8x256xf32> -> vector<8x256xf32>
    %c1_i32_57 = arith.constant 1 : i32
    %84 = tpu.dynamic_rotate %83 by %c1_i32_57 dim 1 : vector<8x256xf32>, i32 -> vector<8x256xf32>
    %c3_58 = arith.constant 3 : index
    %c0_59 = arith.constant 0 : index
    %85 = vector.load %arg2[%c3_58, %c0_59] : memref<9x256xf32, #tpu.memory_space<vmem>>, vector<1x256xf32>
    %86 = vector.broadcast %85 : vector<1x256xf32> to vector<8x256xf32>
    %87 = arith.mulf %86, %84 : vector<8x256xf32>
    %88 = arith.addf %80, %87 : vector<8x256xf32>
    %c4_60 = arith.constant 4 : index
    %c0_61 = arith.constant 0 : index
    %c0_62 = arith.constant 0 : index
    %89 = vector.load %arg5[%c4_60, %c0_61, %c0_62] : memref<9x8x32xf32, #tpu.memory_space<vmem>>, vector<1x8x32xf32>
    %90 = vector.shape_cast %89 : vector<1x8x32xf32> to vector<8x32xf32>
    %cst_63 = arith.constant dense<0.000000e+00> : vector<8x256xf32>
    %91 = tpu.matmul %90, %53, %cst_63 {dimension_numbers = #tpu.dot_dimension_numbers<[1], [0], [0], [1], [0, 0, 1, 1], [], []>} : vector<8x32xf32>, vector<32x256xf32>, vector<8x256xf32> -> vector<8x256xf32>
    %c4_64 = arith.constant 4 : index
    %c0_65 = arith.constant 0 : index
    %92 = vector.load %arg2[%c4_64, %c0_65] : memref<9x256xf32, #tpu.memory_space<vmem>>, vector<1x256xf32>
    %93 = vector.broadcast %92 : vector<1x256xf32> to vector<8x256xf32>
    %94 = arith.mulf %93, %91 : vector<8x256xf32>
    %95 = arith.addf %88, %94 : vector<8x256xf32>
    %c5_66 = arith.constant 5 : index
    %c0_67 = arith.constant 0 : index
    %c0_68 = arith.constant 0 : index
    %96 = vector.load %arg5[%c5_66, %c0_67, %c0_68] : memref<9x8x32xf32, #tpu.memory_space<vmem>>, vector<1x8x32xf32>
    %97 = vector.shape_cast %96 : vector<1x8x32xf32> to vector<8x32xf32>
    %cst_69 = arith.constant dense<0.000000e+00> : vector<8x256xf32>
    %98 = tpu.matmul %97, %53, %cst_69 {dimension_numbers = #tpu.dot_dimension_numbers<[1], [0], [0], [1], [0, 0, 1, 1], [], []>} : vector<8x32xf32>, vector<32x256xf32>, vector<8x256xf32> -> vector<8x256xf32>
    %c255_i32_70 = arith.constant 255 : i32
    %99 = tpu.dynamic_rotate %98 by %c255_i32_70 dim 1 : vector<8x256xf32>, i32 -> vector<8x256xf32>
    %c5_71 = arith.constant 5 : index
    %c0_72 = arith.constant 0 : index
    %100 = vector.load %arg2[%c5_71, %c0_72] : memref<9x256xf32, #tpu.memory_space<vmem>>, vector<1x256xf32>
    %101 = vector.broadcast %100 : vector<1x256xf32> to vector<8x256xf32>
    %102 = arith.mulf %101, %99 : vector<8x256xf32>
    %103 = arith.addf %95, %102 : vector<8x256xf32>
    %c6_73 = arith.constant 6 : index
    %c0_74 = arith.constant 0 : index
    %c0_75 = arith.constant 0 : index
    %104 = vector.load %arg5[%c6_73, %c0_74, %c0_75] : memref<9x8x32xf32, #tpu.memory_space<vmem>>, vector<1x8x32xf32>
    %105 = vector.shape_cast %104 : vector<1x8x32xf32> to vector<8x32xf32>
    %cst_76 = arith.constant dense<0.000000e+00> : vector<8x256xf32>
    %106 = tpu.matmul %105, %53, %cst_76 {dimension_numbers = #tpu.dot_dimension_numbers<[1], [0], [0], [1], [0, 0, 1, 1], [], []>} : vector<8x32xf32>, vector<32x256xf32>, vector<8x256xf32> -> vector<8x256xf32>
    %c241_i32_77 = arith.constant 241 : i32
    %107 = tpu.dynamic_rotate %106 by %c241_i32_77 dim 1 : vector<8x256xf32>, i32 -> vector<8x256xf32>
    %c6_78 = arith.constant 6 : index
    %c0_79 = arith.constant 0 : index
    %108 = vector.load %arg2[%c6_78, %c0_79] : memref<9x256xf32, #tpu.memory_space<vmem>>, vector<1x256xf32>
    %109 = vector.broadcast %108 : vector<1x256xf32> to vector<8x256xf32>
    %110 = arith.mulf %109, %107 : vector<8x256xf32>
    %111 = arith.addf %103, %110 : vector<8x256xf32>
    %c7_80 = arith.constant 7 : index
    %c0_81 = arith.constant 0 : index
    %c0_82 = arith.constant 0 : index
    %112 = vector.load %arg5[%c7_80, %c0_81, %c0_82] : memref<9x8x32xf32, #tpu.memory_space<vmem>>, vector<1x8x32xf32>
    %113 = vector.shape_cast %112 : vector<1x8x32xf32> to vector<8x32xf32>
    %cst_83 = arith.constant dense<0.000000e+00> : vector<8x256xf32>
    %114 = tpu.matmul %113, %53, %cst_83 {dimension_numbers = #tpu.dot_dimension_numbers<[1], [0], [0], [1], [0, 0, 1, 1], [], []>} : vector<8x32xf32>, vector<32x256xf32>, vector<8x256xf32> -> vector<8x256xf32>
    %c240_i32_84 = arith.constant 240 : i32
    %115 = tpu.dynamic_rotate %114 by %c240_i32_84 dim 1 : vector<8x256xf32>, i32 -> vector<8x256xf32>
    %c7_85 = arith.constant 7 : index
    %c0_86 = arith.constant 0 : index
    %116 = vector.load %arg2[%c7_85, %c0_86] : memref<9x256xf32, #tpu.memory_space<vmem>>, vector<1x256xf32>
    %117 = vector.broadcast %116 : vector<1x256xf32> to vector<8x256xf32>
    %118 = arith.mulf %117, %115 : vector<8x256xf32>
    %119 = arith.addf %111, %118 : vector<8x256xf32>
    %c8_87 = arith.constant 8 : index
    %c0_88 = arith.constant 0 : index
    %c0_89 = arith.constant 0 : index
    %120 = vector.load %arg5[%c8_87, %c0_88, %c0_89] : memref<9x8x32xf32, #tpu.memory_space<vmem>>, vector<1x8x32xf32>
    %121 = vector.shape_cast %120 : vector<1x8x32xf32> to vector<8x32xf32>
    %cst_90 = arith.constant dense<0.000000e+00> : vector<8x256xf32>
    %122 = tpu.matmul %121, %53, %cst_90 {dimension_numbers = #tpu.dot_dimension_numbers<[1], [0], [0], [1], [0, 0, 1, 1], [], []>} : vector<8x32xf32>, vector<32x256xf32>, vector<8x256xf32> -> vector<8x256xf32>
    %c239_i32_91 = arith.constant 239 : i32
    %123 = tpu.dynamic_rotate %122 by %c239_i32_91 dim 1 : vector<8x256xf32>, i32 -> vector<8x256xf32>
    %c8_92 = arith.constant 8 : index
    %c0_93 = arith.constant 0 : index
    %124 = vector.load %arg2[%c8_92, %c0_93] : memref<9x256xf32, #tpu.memory_space<vmem>>, vector<1x256xf32>
    %125 = vector.broadcast %124 : vector<1x256xf32> to vector<8x256xf32>
    %126 = arith.mulf %125, %123 : vector<8x256xf32>
    %127 = arith.addf %119, %126 : vector<8x256xf32>
    %128 = vector.extract_strided_slice %127 {offsets = [0, 0], sizes = [2, 256], strides = [1, 1]} : vector<8x256xf32> to vector<2x256xf32>
    %c0_94 = arith.constant 0 : index
    %c0_95 = arith.constant 0 : index
    %c0_96 = arith.constant 0 : index
    %129 = vector.load %arg7[%c0_94, %c0_95, %c0_96] : memref<1x2x256xf32, #tpu.memory_space<vmem>>, vector<1x2x256xf32>
    %130 = vector.shape_cast %129 : vector<1x2x256xf32> to vector<2x256xf32>
    %131 = vector.shape_cast %128 : vector<2x256xf32> to vector<1x2x256xf32>
    tpu.vector_store %arg7[%c0_94, %c0_95, %c0_96], %131 {strides = array<i32>} : memref<1x2x256xf32, #tpu.memory_space<vmem>>, vector<1x2x256xf32>,
    return
  }
  func.func @transform_0(%arg0: i32) -> (i32, i32, i32) {
    %c0_i32 = arith.constant 0 : i32
    %c0_i32_0 = arith.constant 0 : i32
    %c0_i32_1 = arith.constant 0 : i32
    return %arg0, %c0_i32, %c0_i32_0 : i32, i32, i32
  }
  func.func @transform_1(%arg0: i32) -> (i32, i32) {
    %c0_i32 = arith.constant 0 : i32
    %c0_i32_0 = arith.constant 0 : i32
    %c0_i32_1 = arith.constant 0 : i32
    return %c0_i32, %c0_i32_0 : i32, i32
  }
  func.func @transform_2(%arg0: i32) -> (i32, i32) {
    %c0_i32 = arith.constant 0 : i32
    %c0_i32_0 = arith.constant 0 : i32
    %c0_i32_1 = arith.constant 0 : i32
    return %c0_i32, %c0_i32_0 : i32, i32
  }
  func.func @transform_3(%arg0: i32) -> (i32, i32) {
    %c0_i32 = arith.constant 0 : i32
    %c0_i32_0 = arith.constant 0 : i32
    %c0_i32_1 = arith.constant 0 : i32
    return %c0_i32, %c0_i32_0 : i32, i32
  }
  func.func @transform_4(%arg0: i32) -> (i32, i32, i32) {
    %c0_i32 = arith.constant 0 : i32
    %c0_i32_0 = arith.constant 0 : i32
    %c0_i32_1 = arith.constant 0 : i32
    %c0_i32_2 = arith.constant 0 : i32
    return %c0_i32, %c0_i32_0, %c0_i32_1 : i32, i32, i32
  }
  func.func @transform_5(%arg0: i32) -> (i32, i32) {
    %c0_i32 = arith.constant 0 : i32
    %c0_i32_0 = arith.constant 0 : i32
    %c0_i32_1 = arith.constant 0 : i32
    return %c0_i32, %c0_i32_0 : i32, i32
  }
  func.func @transform_6(%arg0: i32) -> (i32, i32, i32) {
    %c0_i32 = arith.constant 0 : i32
    %c0_i32_0 = arith.constant 0 : i32
    %c0_i32_1 = arith.constant 0 : i32
    return %arg0, %c0_i32, %c0_i32_0 : i32, i32, i32
  }
}

</mosaic_0001>

<llo_original>
// kernel: _flow_head_impl.1
$region0: #{_flow_head_impl.1}
  #allocation0 [shape = 'u32[]', space=smem, size = 0x4, offset = 0x4, fixed_abs, tag = 'smem constant byte address 0x4 - core index']
  #allocation1 [shape = 'u32[144,128]{1,0:T(1,128)}', space=vmem, size = 0x12000, scoped, tag = 'internal scratch']
  #allocation2 [shape = 'f32[72,256]{1,0:T(8,128)}', space=vmem, size = 0x12000, scoped, tag = 'scratch operand']
  %s0 = inlined_call_operand.vmem [shape: f32[2,8,256], index: 0, kind: input, shape index: {}]
  %s1 = inlined_call_operand.vmem [shape: f32[9,256], index: 1, kind: input, shape index: {}]
  %s2 = inlined_call_operand.vmem [shape: f32[32,72], index: 2, kind: input, shape index: {}]
  %s3 = inlined_call_operand.vmem [shape: f32[32,1], index: 3, kind: input, shape index: {}]
  %s4 = inlined_call_operand.vmem [shape: f32[9,8,32], index: 4, kind: input, shape index: {}]
  %s5 = inlined_call_operand.vmem [shape: f32[8,1], index: 5, kind: input, shape index: {}]
  %s6 = inlined_call_operand.vmem [shape: f32[2,2,256], index: 6, kind: output, shape index: {}]
  %s7 = sld [smem:[#allocation0]]
  $region57: #{_flow_head_impl.1} parent=0
    _
  %s9 = ssub.s32 1, %s7
  %s10 = scalar_select 0, %s9, %s7
  loop: start=0, step=1, limit=4
  $region2: #{_flow_head_impl.1} parent=0 // loop_pre_header
    _
  $region3: #{_flow_head_impl.1} parent=0 // loop_header
    %s12 = sphi 0, %s16
    %p13 = scmp.ge.s32.totalorder %s12, 4
    %s22 = sphi 0, %s24
    %s25 = sphi 0, %s22
    %s26 = sphi 0, %s25
    %s42 = sphi 0, %s26
    %s46 = sphi 0, %s46
    %s48 = sphi 0, %s46
    %s49 = sphi 0, %s48
    %s63 = sphi 0, %s49
    %s67 = sphi 0, %s67
    %s69 = sphi 0, %s67
    %s70 = sphi 0, %s69
    %s84 = sphi 0, %s70
    %s88 = sphi 0, %s88
    %s90 = sphi 0, %s88
    %s91 = sphi 0, %s90
    %s105 = sphi 0, %s91
    %s109 = sphi 0, %s109
    %s111 = sphi 0, %s109
    %s112 = sphi 0, %s111
    %s126 = sphi 0, %s112
    %s130 = sphi 0, %s130
    %s132 = sphi 0, %s130
    %s133 = sphi 0, %s132
    %s147 = sphi 0, %s133
    %s153 = sphi 0, %s155
    %s156 = sphi 0, %s153
    %s157 = sphi 0, %s156
    %s173 = sphi 0, %s157
  $region4: #{_flow_head_impl.1} parent=0 // loop_header_branch
    %15 = sbr.rel (%p13) target = $region8
  $region5: #{_flow_head_impl.1} parent=0 // loop_body
    %s17 = ssub.s32 %s12, 1
    %s18 = ssub.s32 %s12, 2
    %s19 = sadd.s32 %s12, 1
    %s20 = ssub.s32 %s12, %s19
    %p21 = scmp.eq.s32.totalorder %s20, 0
    %s23 = sadd.s32 %s22, 1
    %s24 = scalar_select %p21, %s22, %s23
    %p27 = pneg %p21
    %p28 = scmp.eq.s32.totalorder %s12, 1
    %p29 = por %p27, %p28
    %p30 = scmp.ne.s32.totalorder %s22, %s25
    %p31 = scmp.eq.s32.totalorder %s12, 0
    %p32 = por %p30, %p31
    %p33 = scmp.ne.s32.totalorder %s22, %s25
    %p34 = scmp.eq.s32.totalorder %s17, 1
    %p35 = por %p33, %p34
    %p36 = scmp.ne.s32.totalorder %s25, %s26
    %p37 = scmp.eq.s32.totalorder %s17, 0
    %p38 = por %p36, %p37
    %p39 = scmp.ne.s32.totalorder %s25, %s26
    %p40 = scmp.eq.s32.totalorder %s18, 1
    %p41 = por %p39, %p40
    %p43 = scmp.ne.s32.totalorder %s26, %s42
    %p44 = scmp.eq.s32.totalorder %s18, 0
    %p45 = por %p43, %p44
    %s47 = sadd.s32 %s46, 1
    %p50 = scmp.eq.s32.totalorder %s12, 1
    %p51 = scmp.ne.s32.totalorder %s46, %s48
    %p52 = scmp.eq.s32.totalorder %s12, 0
    %p53 = por %p51, %p52
    %p54 = scmp.ne.s32.totalorder %s46, %s48
    %p55 = scmp.eq.s32.totalorder %s17, 1
    %p56 = por %p54, %p55
    %p57 = scmp.ne.s32.totalorder %s48, %s49
    %p58 = scmp.eq.s32.totalorder %s17, 0
    %p59 = por %p57, %p58
    %p60 = scmp.ne.s32.totalorder %s48, %s49
    %p61 = scmp.eq.s32.totalorder %s18, 1
    %p62 = por %p60, %p61
    %p64 = scmp.ne.s32.totalorder %s49, %s63
    %p65 = scmp.eq.s32.totalorder %s18, 0
    %p66 = por %p64, %p65
    %s68 = sadd.s32 %s67, 1
    %p71 = scmp.eq.s32.totalorder %s12, 1
    %p72 = scmp.ne.s32.totalorder %s67, %s69
    %p73 = scmp.eq.s32.totalorder %s12, 0
    %p74 = por %p72, %p73
    %p75 = scmp.ne.s32.totalorder %s67, %s69
    %p76 = scmp.eq.s32.totalorder %s17, 1
    %p77 = por %p75, %p76
    %p78 = scmp.ne.s32.totalorder %s69, %s70
    %p79 = scmp.eq.s32.totalorder %s17, 0
    %p80 = por %p78, %p79
    %p81 = scmp.ne.s32.totalorder %s69, %s70
    %p82 = scmp.eq.s32.totalorder %s18, 1
    %p83 = por %p81, %p82
    %p85 = scmp.ne.s32.totalorder %s70, %s84
    %p86 = scmp.eq.s32.totalorder %s18, 0
    %p87 = por %p85, %p86
    %s89 = sadd.s32 %s88, 1
    %p92 = scmp.eq.s32.totalorder %s12, 1
    %p93 = scmp.ne.s32.totalorder %s88, %s90
    %p94 = scmp.eq.s32.totalorder %s12, 0
    %p95 = por %p93, %p94
    %p96 = scmp.ne.s32.totalorder %s88, %s90
    %p97 = scmp.eq.s32.totalorder %s17, 1
    %p98 = por %p96, %p97
    %p99 = scmp.ne.s32.totalorder %s90, %s91
    %p100 = scmp.eq.s32.totalorder %s17, 0
    %p101 = por %p99, %p100
    %p102 = scmp.ne.s32.totalorder %s90, %s91
    %p103 = scmp.eq.s32.totalorder %s18, 1
    %p104 = por %p102, %p103
    %p106 = scmp.ne.s32.totalorder %s91, %s105
    %p107 = scmp.eq.s32.totalorder %s18, 0
    %p108 = por %p106, %p107
    %s110 = sadd.s32 %s109, 1
    %p113 = scmp.eq.s32.totalorder %s12, 1
    %p114 = scmp.ne.s32.totalorder %s109, %s111
    %p115 = scmp.eq.s32.totalorder %s12, 0
    %p116 = por %p114, %p115
    %p117 = scmp.ne.s32.totalorder %s109, %s111
    %p118 = scmp.eq.s32.totalorder %s17, 1
    %p119 = por %p117, %p118
    %p120 = scmp.ne.s32.totalorder %s111, %s112
    %p121 = scmp.eq.s32.totalorder %s17, 0
    %p122 = por %p120, %p121
    %p123 = scmp.ne.s32.totalorder %s111, %s112
    %p124 = scmp.eq.s32.totalorder %s18, 1
    %p125 = por %p123, %p124
    %p127 = scmp.ne.s32.totalorder %s112, %s126
    %p128 = scmp.eq.s32.totalorder %s18, 0
    %p129 = por %p127, %p128
    %s131 = sadd.s32 %s130, 1
    %p134 = scmp.eq.s32.totalorder %s12, 1
    %p135 = scmp.ne.s32.totalorder %s130, %s132
    %p136 = scmp.eq.s32.totalorder %s12, 0
    %p137 = por %p135, %p136
    %p138 = scmp.ne.s32.totalorder %s130, %s132
    %p139 = scmp.eq.s32.totalorder %s17, 1
    %p140 = por %p138, %p139
    %p141 = scmp.ne.s32.totalorder %s132, %s133
    %p142 = scmp.eq.s32.totalorder %s17, 0
    %p143 = por %p141, %p142
    %p144 = scmp.ne.s32.totalorder %s132, %s133
    %p145 = scmp.eq.s32.totalorder %s18, 1
    %p146 = por %p144, %p145
    %p148 = scmp.ne.s32.totalorder %s133, %s147
    %p149 = scmp.eq.s32.totalorder %s18, 0
    %p150 = por %p148, %p149
    %s151 = ssub.s32 %s12, %s19
    %p152 = scmp.eq.s32.totalorder %s151, 0
    %s154 = sadd.s32 %s153, 1
    %s155 = scalar_select %p152, %s153, %s154
    %p158 = pneg %p152
    %p159 = scmp.eq.s32.totalorder %s12, 1
    %p160 = por %p158, %p159
    %p161 = scmp.ne.s32.totalorder %s153, %s156
    %p162 = scmp.eq.s32.totalorder %s12, 0
    %p163 = por %p161, %p162
    %p164 = scmp.ne.s32.totalorder %s153, %s156
    %p165 = scmp.eq.s32.totalorder %s17, 1
    %p166 = por %p164, %p165
    %p167 = scmp.ne.s32.totalorder %s156, %s157
    %p168 = scmp.eq.s32.totalorder %s17, 0
    %p169 = por %p167, %p168
    %p170 = scmp.ne.s32.totalorder %s156, %s157
    %p171 = scmp.eq.s32.totalorder %s18, 1
    %p172 = por %p170, %p171
    %p174 = scmp.ne.s32.totalorder %s157, %s173
    %p175 = scmp.eq.s32.totalorder %s18, 0
    %p176 = por %p174, %p175
    %p177 = scmp.le.s32.totalorder 1, %s12
    %p178 = scmp.lt.s32.totalorder %s12, 3
    %p179 = pnand %p177, %p178
    %p180 = pneg %p179
    // Predicated region
    $region9: #{_flow_head_impl.1} parent=5 // pred_check
      _
    $region10: #{_flow_head_impl.1} parent=5 // pred_check_branch
      %182 = sbr.rel (%p179) target = $region12
    $region11: #{_flow_head_impl.1} parent=5 // pred_region
      %s183 = ssub.s32 %s12, 1
      // Predicated region
      $region13: #{_flow_head_impl.1} parent=11 // pred_check
        %p184 = pneg %p59
      $region14: #{_flow_head_impl.1} parent=11 // pred_check_branch
        %186 = sbr.rel (%p184) target = $region16
      $region15: #{_flow_head_impl.1} parent=11 // pred_region
        _
      $region16: #{_flow_head_impl.1} parent=11 // pred_fallthru
        _
      // Predicated region
      $region17: #{_flow_head_impl.1} parent=11 // pred_check
        %p187 = pneg %p80
      $region18: #{_flow_head_impl.1} parent=11 // pred_check_branch
        %189 = sbr.rel (%p187) target = $region20
      $region19: #{_flow_head_impl.1} parent=11 // pred_region
        _
      $region20: #{_flow_head_impl.1} parent=11 // pred_fallthru
        _
      // Predicated region
      $region21: #{_flow_head_impl.1} parent=11 // pred_check
        %p190 = pneg %p101
      $region22: #{_flow_head_impl.1} parent=11 // pred_check_branch
        %192 = sbr.rel (%p190) target = $region24
      $region23: #{_flow_head_impl.1} parent=11 // pred_region
        _
      $region24: #{_flow_head_impl.1} parent=11 // pred_fallthru
        _
      // Predicated region
      $region25: #{_flow_head_impl.1} parent=11 // pred_check
        %p193 = pneg %p122
      $region26: #{_flow_head_impl.1} parent=11 // pred_check_branch
        %195 = sbr.rel (%p193) target = $region28
      $region27: #{_flow_head_impl.1} parent=11 // pred_region
        _
      $region28: #{_flow_head_impl.1} parent=11 // pred_fallthru
        _
      // Predicated region
      $region29: #{_flow_head_impl.1} parent=11 // pred_check
        %p196 = pneg %p143
      $region30: #{_flow_head_impl.1} parent=11 // pred_check_branch
        %198 = sbr.rel (%p196) target = $region32
      $region31: #{_flow_head_impl.1} parent=11 // pred_region
        _
      $region32: #{_flow_head_impl.1} parent=11 // pred_fallthru
        _
    $region12: #{_flow_head_impl.1} parent=5 // pred_fallthru
      _
    %p199 = scmp.lt.s32.totalorder %s12, 2
    // Predicated region
    $region33: #{_flow_head_impl.1} parent=5 // pred_check
      %p200 = pneg %p199
    $region34: #{_flow_head_impl.1} parent=5 // pred_check_branch
      %202 = sbr.rel (%p200) target = $region36
    $region35: #{_flow_head_impl.1} parent=5 // pred_region
      // Predicated region
      $region37: #{_flow_head_impl.1} parent=35 // pred_check
        %p203 = pneg %p32
      $region38: #{_flow_head_impl.1} parent=35 // pred_check_branch
        %205 = sbr.rel (%p203) target = $region40
      $region39: #{_flow_head_impl.1} parent=35 // pred_region
        %p206 = scmp.lt.s32.totalorder %s12, 1
        %s207 = scalar_select %p206, %s12, 1
        %s208 = smul.addr %s207, 2
        %s209 = smul.addr %s208, 8
        %s210 = scalar_lea.vmem %s0, %s209
      $region40: #{_flow_head_impl.1} parent=35 // pred_fallthru
        _
    $region36: #{_flow_head_impl.1} parent=5 // pred_fallthru
      _
    %p211 = scmp.le.s32.totalorder 1, %s12
    %p212 = scmp.lt.s32.totalorder %s12, 3
    %p213 = pnand %p211, %p212
    %p214 = pneg %p213
    // Predicated region
    $region41: #{_flow_head_impl.1} parent=5 // pred_check
      _
    $region42: #{_flow_head_impl.1} parent=5 // pred_check_branch
      %216 = sbr.rel (%p213) target = $region44
    $region43: #{_flow_head_impl.1} parent=5 // pred_region
      %s217 = ssub.s32 %s12, 1
      %p218 = scmp.lt.s32.totalorder %s17, 1
      %s219 = scalar_select %p218, %s17, 1
      %s220 = smul.addr %s219, 2
      %s221 = smul.addr %s220, 8
      %s222 = scalar_lea.vmem %s0, %s221
      %p223 = pneg %p38
      %p224 = pneg %p35
      %p225 = pneg %p59
      %p226 = pneg %p56
      %p227 = pneg %p80
      %p228 = pneg %p77
      %p229 = pneg %p101
      %p230 = pneg %p98
      %p231 = pneg %p122
      %p232 = pneg %p119
      %p233 = pneg %p143
      %p234 = pneg %p140
      %p235 = pneg %p169
      %p236 = pneg %p166
      %p237 = scmp.lt.s32.totalorder %s17, 1
      %s238 = scalar_select %p237, %s17, 1
      %s239 = smul.addr %s238, 2
      %s240 = smul.addr %s239, 2
      %s241 = scalar_lea.vmem %s6, %s240
      %p242 = scmp.lt.s32.totalorder %s17, 1
      %s243 = scalar_select %p242, %s17, 1
      %s244 = smul.addr %s243, 2
      %s245 = smul.addr %s244, 8
      %s246 = scalar_lea.vmem %s0, %s245
      %p247 = scmp.lt.s32.totalorder %s17, 1
      %s248 = scalar_select %p247, %s17, 1
      %s249 = smul.addr %s248, 2
      %s250 = smul.addr %s249, 2
      %s251 = scalar_lea.vmem %s6, %s250
      %v252 = vld [vmem:[%s246] sm:$0xff]
      %v253 = vld [vmem:[%s246 + $0x8] sm:$0xff]
      %254 = vrot.lane.b32.xlu0 %v252, 17
      %v255 = vpop.permute.xlu0 %254
      %256 = vrot.lane.b32.xlu0 %v253, 17
      %v257 = vpop.permute.xlu0 %256
      %v258 = vlaneseq
      %v259 = vand.u32 %v258, 127
      %vm260 = vcmp.lt.s32.totalorder %v259, 17
      %v261 = vsel %vm260, %v255, %v257
      %v262 = vsel %vm260, %v257, %v255
      %v263 = vld [vmem:[%s1] ss:$8 sm:$0x3]
      %v265 = vlaneseq
      %v266 = vshrl.u32 %v265, 7
      %v267 = vsub.s32 0, %v266
      %v268 = vrot.slane %v263, %v267
      %v269 = vlaneseq
      %v270 = vshrl.u32 %v269, 7
      %v271 = vsub.s32 1, %v270
      %v272 = vrot.slane %v263, %v271
      %v275 = vmul.f32 %v262, %v268
      %v276 = vmul.f32 %v261, %v272
      %277 = vst [vmem:[#allocation2] sm:$0xff] %v275
      %278 = vst [vmem:[#allocation2 + $0x8] sm:$0xff] %v276
      %279 = vrot.lane.b32.xlu0 %v252, 16
      %v280 = vpop.permute.xlu0 %279
      %281 = vrot.lane.b32.xlu0 %v253, 16
      %v282 = vpop.permute.xlu0 %281
      %vm283 = vcmp.lt.s32.totalorder %v259, 16
      %v284 = vsel %vm283, %v280, %v282
      %v285 = vsel %vm283, %v282, %v280
      %s286 = scalar_lea.vmem %s1, 1
      %v287 = vld [vmem:[%s286] ss:$8 sm:$0x3]
      %v289 = vlaneseq
      %v290 = vshrl.u32 %v289, 7
      %v291 = vsub.s32 0, %v290
      %v292 = vrot.slane %v287, %v291
      %v293 = vlaneseq
      %v294 = vshrl.u32 %v293, 7
      %v295 = vsub.s32 1, %v294
      %v296 = vrot.slane %v287, %v295
      %v299 = vmul.f32 %v285, %v292
      %v300 = vmul.f32 %v284, %v296
      %301 = vst [vmem:[#allocation2 + $0x10] sm:$0xff] %v299
      %302 = vst [vmem:[#allocation2 + $0x18] sm:$0xff] %v300
      %303 = vrot.lane.b32.xlu0 %v252, 15
      %v304 = vpop.permute.xlu0 %303
      %305 = vrot.lane.b32.xlu0 %v253, 15
      %v306 = vpop.permute.xlu0 %305
      %vm307 = vcmp.lt.s32.totalorder %v259, 15
      %v308 = vsel %vm307, %v304, %v306
      %v309 = vsel %vm307, %v306, %v304
      %s310 = scalar_lea.vmem %s1, 2
      %v311 = vld [vmem:[%s310] ss:$8 sm:$0x3]
      %v313 = vlaneseq
      %v314 = vshrl.u32 %v313, 7
      %v315 = vsub.s32 0, %v314
      %v316 = vrot.slane %v311, %v315
      %v317 = vlaneseq
      %v318 = vshrl.u32 %v317, 7
      %v319 = vsub.s32 1, %v318
      %v320 = vrot.slane %v311, %v319
      %v323 = vmul.f32 %v309, %v316
      %v324 = vmul.f32 %v308, %v320
      %325 = vst [vmem:[#allocation2 + $0x20] sm:$0xff] %v323
      %326 = vst [vmem:[#allocation2 + $0x28] sm:$0xff] %v324
      %327 = vrot.lane.b32.xlu0 %v252, 1
      %v328 = vpop.permute.xlu0 %327
      %329 = vrot.lane.b32.xlu0 %v253, 1
      %v330 = vpop.permute.xlu0 %329
      %vm331 = vcmp.lt.s32.totalorder %v259, 1
      %v332 = vsel %vm331, %v328, %v330
      %v333 = vsel %vm331, %v330, %v328
      %s334 = scalar_lea.vmem %s1, 3
      %v335 = vld [vmem:[%s334] ss:$8 sm:$0x3]
      %v337 = vlaneseq
      %v338 = vshrl.u32 %v337, 7
      %v339 = vsub.s32 0, %v338
      %v340 = vrot.slane %v335, %v339
      %v341 = vlaneseq
      %v342 = vshrl.u32 %v341, 7
      %v343 = vsub.s32 1, %v342
      %v344 = vrot.slane %v335, %v343
      %v347 = vmul.f32 %v333, %v340
      %v348 = vmul.f32 %v332, %v344
      %349 = vst [vmem:[#allocation2 + $0x30] sm:$0xff] %v347
      %350 = vst [vmem:[#allocation2 + $0x38] sm:$0xff] %v348
      %s351 = scalar_lea.vmem %s1, 4
      %v352 = vld [vmem:[%s351] ss:$8 sm:$0x3]
      %v354 = vlaneseq
      %v355 = vshrl.u32 %v354, 7
      %v356 = vsub.s32 0, %v355
      %v357 = vrot.slane %v352, %v356
      %v358 = vlaneseq
      %v359 = vshrl.u32 %v358, 7
      %v360 = vsub.s32 1, %v359
      %v361 = vrot.slane %v352, %v360
      %v364 = vmul.f32 %v252, %v357
      %v365 = vmul.f32 %v253, %v361
      %366 = vst [vmem:[#allocation2 + $0x40] sm:$0xff] %v364
      %367 = vst [vmem:[#allocation2 + $0x48] sm:$0xff] %v365
      %368 = vrot.lane.b32.xlu0 %v252, 127
      %v369 = vpop.permute.xlu0 %368
      %370 = vrot.lane.b32.xlu0 %v253, 127
      %v371 = vpop.permute.xlu0 %370
      %vm372 = vcmp.lt.s32.totalorder %v259, 127
      %v373 = vsel %vm372, %v369, %v371
      %v374 = vsel %vm372, %v371, %v369
      %s375 = scalar_lea.vmem %s1, 5
      %v376 = vld [vmem:[%s375] ss:$8 sm:$0x3]
      %v378 = vlaneseq
      %v379 = vshrl.u32 %v378, 7
      %v380 = vsub.s32 0, %v379
      %v381 = vrot.slane %v376, %v380
      %v382 = vlaneseq
      %v383 = vshrl.u32 %v382, 7
      %v384 = vsub.s32 1, %v383
      %v385 = vrot.slane %v376, %v384
      %v388 = vmul.f32 %v373, %v381
      %v389 = vmul.f32 %v374, %v385
      %390 = vst [vmem:[#allocation2 + $0x50] sm:$0xff] %v388
      %391 = vst [vmem:[#allocation2 + $0x58] sm:$0xff] %v389
      %392 = vrot.lane.b32.xlu0 %v252, 113
      %v393 = vpop.permute.xlu0 %392
      %394 = vrot.lane.b32.xlu0 %v253, 113
      %v395 = vpop.permute.xlu0 %394
      %vm396 = vcmp.lt.s32.totalorder %v259, 113
      %v397 = vsel %vm396, %v393, %v395
      %v398 = vsel %vm396, %v395, %v393
      %s399 = scalar_lea.vmem %s1, 6
      %v400 = vld [vmem:[%s399] ss:$8 sm:$0x3]
      %v402 = vlaneseq
      %v403 = vshrl.u32 %v402, 7
      %v404 = vsub.s32 0, %v403
      %v405 = vrot.slane %v400, %v404
      %v406 = vlaneseq
      %v407 = vshrl.u32 %v406, 7
      %v408 = vsub.s32 1, %v407
      %v409 = vrot.slane %v400, %v408
      %v412 = vmul.f32 %v397, %v405
      %v413 = vmul.f32 %v398, %v409
      %414 = vst [vmem:[#allocation2 + $0x60] sm:$0xff] %v412
      %415 = vst [vmem:[#allocation2 + $0x68] sm:$0xff] %v413
      %416 = vrot.lane.b32.xlu0 %v252, 112
      %v417 = vpop.permute.xlu0 %416
      %418 = vrot.lane.b32.xlu0 %v253, 112
      %v419 = vpop.permute.xlu0 %418
      %vm420 = vcmp.lt.s32.totalorder %v259, 112
      %v421 = vsel %vm420, %v417, %v419
      %v422 = vsel %vm420, %v419, %v417
      %s423 = scalar_lea.vmem %s1, 7
      %v424 = vld [vmem:[%s423] ss:$8 sm:$0x3]
      %v426 = vlaneseq
      %v427 = vshrl.u32 %v426, 7
      %v428 = vsub.s32 0, %v427
      %v429 = vrot.slane %v424, %v428
      %v430 = vlaneseq
      %v431 = vshrl.u32 %v430, 7
      %v432 = vsub.s32 1, %v431
      %v433 = vrot.slane %v424, %v432
      %v436 = vmul.f32 %v421, %v429
      %v437 = vmul.f32 %v422, %v433
      %438 = vst [vmem:[#allocation2 + $0x70] sm:$0xff] %v436
      %439 = vst [vmem:[#allocation2 + $0x78] sm:$0xff] %v437
      %440 = vrot.lane.b32.xlu0 %v252, 111
      %v441 = vpop.permute.xlu0 %440
      %442 = vrot.lane.b32.xlu0 %v253, 111
      %v443 = vpop.permute.xlu0 %442
      %vm444 = vcmp.lt.s32.totalorder %v259, 111
      %v445 = vsel %vm444, %v441, %v443
      %v446 = vsel %vm444, %v443, %v441
      %s447 = scalar_lea.vmem %s1, 16
      %v448 = vld [vmem:[%s447] ss:$8 sm:$0x3]
      %v450 = vlaneseq
      %v451 = vshrl.u32 %v450, 7
      %v452 = vsub.s32 0, %v451
      %v453 = vrot.slane %v448, %v452
      %v454 = vlaneseq
      %v455 = vshrl.u32 %v454, 7
      %v456 = vsub.s32 1, %v455
      %v457 = vrot.slane %v448, %v456
      %v460 = vmul.f32 %v445, %v453
      %v461 = vmul.f32 %v446, %v457
      %462 = vst [vmem:[#allocation2 + $0x80] sm:$0xff] %v460
      %463 = vst [vmem:[#allocation2 + $0x88] sm:$0xff] %v461
      %v464 = vld [vmem:[%s2] sm:$0xff]
      %v465 = vld [vmem:[%s2 + $0x8] sm:$0xff]
      %v466 = vld [vmem:[%s2 + $0x10] sm:$0xff]
      %v467 = vld [vmem:[%s2 + $0x18] sm:$0xff]
      %v468 = vld [vmem:[#allocation2] sm:$0xff]
      %v469 = vld [vmem:[#allocation2 + $0x8] sm:$0xff]
      %v470 = vld [vmem:[#allocation2 + $0x10] sm:$0xff]
      %v471 = vld [vmem:[#allocation2 + $0x18] sm:$0xff]
      %v472 = vld [vmem:[#allocation2 + $0x20] sm:$0xff]
      %v473 = vld [vmem:[#allocation2 + $0x28] sm:$0xff]
      %v474 = vld [vmem:[#allocation2 + $0x30] sm:$0xff]
      %v475 = vld [vmem:[#allocation2 + $0x38] sm:$0xff]
      %v476 = vld [vmem:[#allocation2 + $0x40] sm:$0xff]
      %v477 = vld [vmem:[#allocation2 + $0x48] sm:$0xff]
      %v478 = vld [vmem:[#allocation2 + $0x50] sm:$0xff]
      %v479 = vld [vmem:[#allocation2 + $0x58] sm:$0xff]
      %v480 = vld [vmem:[#allocation2 + $0x60] sm:$0xff]
      %v481 = vld [vmem:[#allocation2 + $0x68] sm:$0xff]
      %v482 = vld [vmem:[#allocation2 + $0x70] sm:$0xff]
      %v483 = vld [vmem:[#allocation2 + $0x78] sm:$0xff]
      %v484 = vld [vmem:[#allocation2 + $0x80] sm:$0xff]
      %v485 = vld [vmem:[#allocation2 + $0x88] sm:$0xff]
      %v486 = vld [vmem:[%s3] sm:$0xff]
      %v487 = vld [vmem:[%s3 + $0x8] sm:$0xff]
      %v488 = vld [vmem:[%s3 + $0x10] sm:$0xff]
      %v489 = vld [vmem:[%s3 + $0x18] sm:$0xff]
      %491 = vset.pattern.permute.xlu0 0
      %492 = vperm.xlu0 %491, %v486
      %v493 = vpop.permute.xlu0 %492
      %496 = vset.pattern.permute.xlu0 0
      %497 = vperm.xlu0 %496, %v487
      %v498 = vpop.permute.xlu0 %497
      %501 = vset.pattern.permute.xlu0 0
      %502 = vperm.xlu0 %501, %v488
      %v503 = vpop.permute.xlu0 %502
      %506 = vset.pattern.permute.xlu0 0
      %507 = vperm.xlu0 %506, %v489
      %v508 = vpop.permute.xlu0 %507
      %vm510 = vcmask 588800
      %v512 = vsel %vm510, %v464, 0
      %v515 = vsel %vm510, %v465, 0
      %v518 = vsel %vm510, %v466, 0
      %v521 = vsel %vm510, %v467, 0
      %523 = vmatprep.subr.mxu0 0.0
      %524 = vmatpush1.msra.mxu0 0.0
      %525 = vmatprep.subr.mxu0 0.0
      %526 = vmatpush1.msra.mxu0 0.0
      %527 = vmatprep.subr.mxu0 0.0
      %528 = vmatpush1.msra.mxu0 0.0
      %529 = vmatprep.subr.mxu0 0.0
      %530 = vmatpush1.msra.mxu0 0.0
      %531 = vmatprep.subr.mxu0 0.0
      %532 = vmatpush1.msra.mxu0 0.0
      %533 = vmatprep.subr.mxu0 0.0
      %534 = vmatpush1.msra.mxu0 0.0
      %535 = vmatprep.subr.mxu0 0.0
      %536 = vmatpush1.msra.mxu0 0.0
      %537 = vmatprep.subr.mxu0 %v485
      %538 = vmatpush1.msra.mxu0 %v484
      %539 = vmatprep.subr.mxu0 %v483
      %540 = vmatpush1.msra.mxu0 %v482
      %541 = vmatprep.subr.mxu0 %v481
      %542 = vmatpush1.msra.mxu0 %v480
      %543 = vmatprep.subr.mxu0 %v479
      %544 = vmatpush1.msra.mxu0 %v478
      %545 = vmatprep.subr.mxu0 %v477
      %546 = vmatpush1.msra.mxu0 %v476
      %547 = vmatprep.subr.mxu0 %v475
      %548 = vmatpush1.msra.mxu0 %v474
      %549 = vmatprep.subr.mxu0 %v473
      %550 = vmatpush1.msra.mxu0 %v472
      %551 = vmatprep.subr.mxu0 %v471
      %552 = vmatpush1.msra.mxu0 %v470
      %553 = vmatprep.subr.mxu0 %v469
      %554 = vmatpush1.msra.mxu0 %v468
      %555 = vmatprep.subr.mxu0 0.0
      %556 = vmatpush2.msra.mxu0 0.0
      %557 = vmatprep.subr.mxu0 0.0
      %558 = vmatpush2.msra.mxu0 0.0
      %559 = vmatprep.subr.mxu0 0.0
      %560 = vmatpush2.msra.mxu0 0.0
      %561 = vmatprep.subr.mxu0 0.0
      %562 = vmatpush2.msra.mxu0 0.0
      %563 = vmatprep.subr.mxu0 0.0
      %564 = vmatpush2.msra.mxu0 0.0
      %565 = vmatprep.subr.mxu0 0.0
      %566 = vmatpush2.msra.mxu0 0.0
      %567 = vmatprep.subr.mxu0 0.0
      %568 = vmatpush2.msra.mxu0 0.0
      %569 = vmatprep.subr.mxu0 0.0
      %570 = vmatpush2.msra.mxu0 0.0
      %571 = vmatprep.subr.mxu0 0.0
      %572 = vmatpush2.msra.mxu0 0.0
      %573 = vmatprep.subr.mxu0 0.0
      %574 = vmatpush2.msra.mxu0 0.0
      %575 = vmatprep.subr.mxu0 0.0
      %576 = vmatpush2.msra.mxu0 0.0
      %577 = vmatprep.subr.mxu0 0.0
      %578 = vmatpush2.msra.mxu0 0.0
      %579 = vmatprep.subr.mxu0 0.0
      %580 = vmatpush2.msra.mxu0 0.0
      %581 = vmatprep.subr.mxu0 0.0
      %582 = vmatpush2.msra.mxu0 0.0
      %583 = vmatprep.subr.mxu0 0.0
      %584 = vmatpush2.msra.mxu0 0.0
      %585 = vmatprep.subr.mxu0 0.0
      %586 = vmatpush2.msra.mxu0 0.0
      %587 = vmatprep.mubr.f32.mxu0 0.0
      %588 = vmatmul.mubr.f32.gmra.mxu0 %v512
      %v589 = vpop.f32.mrf.mxu0
      %v590 = vadd.f32 %v493, %v589
      %v591 = vpop.f32.mrf.mxu0
      %v592 = vadd.f32 %v493, %v591
      %593 = vmatprep.mubr.f32.mxu0 0.0
      %594 = vmatmul.mubr.f32.gmra.mxu0 %v515
      %v595 = vpop.f32.mrf.mxu0
      %v596 = vadd.f32 %v498, %v595
      %v597 = vpop.f32.mrf.mxu0
      %v598 = vadd.f32 %v498, %v597
      %599 = vmatprep.mubr.f32.mxu0 0.0
      %600 = vmatmul.mubr.f32.gmra.mxu0 %v518
      %v601 = vpop.f32.mrf.mxu0
      %v602 = vadd.f32 %v503, %v601
      %v603 = vpop.f32.mrf.mxu0
      %v604 = vadd.f32 %v503, %v603
      %605 = vmatprep.mubr.f32.mxu0 0.0
      %606 = vmatmul.mubr.f32.gmra.mxu0 %v521
      %v607 = vpop.f32.mrf.mxu0
      %v608 = vadd.f32 %v508, %v607
      %v609 = vpop.f32.mrf.mxu0
      %v610 = vadd.f32 %v508, %v609
      %611 = vdwg.mxu0
      %v612 = vmax.f32 %v590, 0.0
      %v613 = vmax.f32 %v592, 0.0
      %v614 = vmax.f32 %v596, 0.0
      %v615 = vmax.f32 %v598, 0.0
      %v616 = vmax.f32 %v602, 0.0
      %v617 = vmax.f32 %v604, 0.0
      %v618 = vmax.f32 %v608, 0.0
      %v619 = vmax.f32 %v610, 0.0
      %v620 = vld [vmem:[%s5] sm:$0xff]
      %622 = vset.pattern.permute.xlu0 0
      %623 = vperm.xlu0 %622, %v620
      %v624 = vpop.permute.xlu0 %623
      %v626 = vld [vmem:[%s4] sm:$0xff]
      %vm627 = vcmask 261120
      %v629 = vsel %vm627, %v626, 0
      %631 = vmatprep.subr.mxu0 0.0
      %632 = vmatpush1.msra.mxu0 0.0
      %633 = vmatprep.subr.mxu0 0.0
      %634 = vmatpush1.msra.mxu0 0.0
      %635 = vmatprep.subr.mxu0 0.0
      %636 = vmatpush1.msra.mxu0 0.0
      %637 = vmatprep.subr.mxu0 0.0
      %638 = vmatpush1.msra.mxu0 0.0
      %639 = vmatprep.subr.mxu0 0.0
      %640 = vmatpush1.msra.mxu0 0.0
      %641 = vmatprep.subr.mxu0 0.0
      %642 = vmatpush1.msra.mxu0 0.0
      %643 = vmatprep.subr.mxu0 0.0
      %644 = vmatpush1.msra.mxu0 0.0
      %645 = vmatprep.subr.mxu0 0.0
      %646 = vmatpush1.msra.mxu0 0.0
      %647 = vmatprep.subr.mxu0 0.0
      %648 = vmatpush1.msra.mxu0 0.0
      %649 = vmatprep.subr.mxu0 0.0
      %650 = vmatpush1.msra.mxu0 0.0
      %651 = vmatprep.subr.mxu0 0.0
      %652 = vmatpush1.msra.mxu0 0.0
      %653 = vmatprep.subr.mxu0 0.0
      %654 = vmatpush1.msra.mxu0 0.0
      %655 = vmatprep.subr.mxu0 %v619
      %656 = vmatpush1.msra.mxu0 %v618
      %657 = vmatprep.subr.mxu0 %v617
      %658 = vmatpush1.msra.mxu0 %v616
      %659 = vmatprep.subr.mxu0 %v615
      %660 = vmatpush1.msra.mxu0 %v614
      %661 = vmatprep.subr.mxu0 %v613
      %662 = vmatpush1.msra.mxu0 %v612
      %663 = vmatprep.subr.mxu0 0.0
      %664 = vmatpush2.msra.mxu0 0.0
      %665 = vmatprep.subr.mxu0 0.0
      %666 = vmatpush2.msra.mxu0 0.0
      %667 = vmatprep.subr.mxu0 0.0
      %668 = vmatpush2.msra.mxu0 0.0
      %669 = vmatprep.subr.mxu0 0.0
      %670 = vmatpush2.msra.mxu0 0.0
      %671 = vmatprep.subr.mxu0 0.0
      %672 = vmatpush2.msra.mxu0 0.0
      %673 = vmatprep.subr.mxu0 0.0
      %674 = vmatpush2.msra.mxu0 0.0
      %675 = vmatprep.subr.mxu0 0.0
      %676 = vmatpush2.msra.mxu0 0.0
      %677 = vmatprep.subr.mxu0 0.0
      %678 = vmatpush2.msra.mxu0 0.0
      %679 = vmatprep.subr.mxu0 0.0
      %680 = vmatpush2.msra.mxu0 0.0
      %681 = vmatprep.subr.mxu0 0.0
      %682 = vmatpush2.msra.mxu0 0.0
      %683 = vmatprep.subr.mxu0 0.0
      %684 = vmatpush2.msra.mxu0 0.0
      %685 = vmatprep.subr.mxu0 0.0
      %686 = vmatpush2.msra.mxu0 0.0
      %687 = vmatprep.subr.mxu0 0.0
      %688 = vmatpush2.msra.mxu0 0.0
      %689 = vmatprep.subr.mxu0 0.0
      %690 = vmatpush2.msra.mxu0 0.0
      %691 = vmatprep.subr.mxu0 0.0
      %692 = vmatpush2.msra.mxu0 0.0
      %693 = vmatprep.subr.mxu0 0.0
      %694 = vmatpush2.msra.mxu0 0.0
      %695 = vmatprep.mubr.f32.mxu0 0.0
      %696 = vmatmul.mubr.f32.gmra.mxu0 %v629
      %v697 = vpop.f32.mrf.mxu0
      %v698 = vadd.f32 0.0, %v697
      %v699 = vpop.f32.mrf.mxu0
      %v700 = vadd.f32 0.0, %v699
      %701 = vdwg.mxu0
      %702 = vrot.lane.b32.xlu0 %v698, 17
      %v703 = vpop.permute.xlu0 %702
      %704 = vrot.lane.b32.xlu0 %v700, 17
      %v705 = vpop.permute.xlu0 %704
      %v706 = vsel %vm260, %v703, %v705
      %v707 = vsel %vm260, %v705, %v703
      %v708 = vld [vmem:[%s1] ss:$8 sm:$0x3]
      %v710 = vlaneseq
      %v711 = vshrl.u32 %v710, 7
      %v712 = vsub.s32 0, %v711
      %v713 = vrot.slane %v708, %v712
      %v714 = vlaneseq
      %v715 = vshrl.u32 %v714, 7
      %v716 = vsub.s32 1, %v715
      %v717 = vrot.slane %v708, %v716
      %v720 = vmul.f32 %v713, %v707
      %v721 = vmul.f32 %v717, %v706
      %v722 = vadd.f32 %v624, %v720
      %v723 = vadd.f32 %v624, %v721
      %s724 = scalar_lea.vmem %s4, 8
      %v725 = vld [vmem:[%s724] sm:$0xff]
      %v727 = vsel %vm627, %v725, 0
      %729 = vmatprep.subr.mxu0 0.0
      %730 = vmatpush1.msra.mxu0 0.0
      %731 = vmatprep.subr.mxu0 0.0
      %732 = vmatpush1.msra.mxu0 0.0
      %733 = vmatprep.subr.mxu0 0.0
      %734 = vmatpush1.msra.mxu0 0.0
      %735 = vmatprep.subr.mxu0 0.0
      %736 = vmatpush1.msra.mxu0 0.0
      %737 = vmatprep.subr.mxu0 0.0
      %738 = vmatpush1.msra.mxu0 0.0
      %739 = vmatprep.subr.mxu0 0.0
      %740 = vmatpush1.msra.mxu0 0.0
      %741 = vmatprep.subr.mxu0 0.0
      %742 = vmatpush1.msra.mxu0 0.0
      %743 = vmatprep.subr.mxu0 0.0
      %744 = vmatpush1.msra.mxu0 0.0
      %745 = vmatprep.subr.mxu0 0.0
      %746 = vmatpush1.msra.mxu0 0.0
      %747 = vmatprep.subr.mxu0 0.0
      %748 = vmatpush1.msra.mxu0 0.0
      %749 = vmatprep.subr.mxu0 0.0
      %750 = vmatpush1.msra.mxu0 0.0
      %751 = vmatprep.subr.mxu0 0.0
      %752 = vmatpush1.msra.mxu0 0.0
      %753 = vmatprep.subr.mxu0 %v619
      %754 = vmatpush1.msra.mxu0 %v618
      %755 = vmatprep.subr.mxu0 %v617
      %756 = vmatpush1.msra.mxu0 %v616
      %757 = vmatprep.subr.mxu0 %v615
      %758 = vmatpush1.msra.mxu0 %v614
      %759 = vmatprep.subr.mxu0 %v613
      %760 = vmatpush1.msra.mxu0 %v612
      %761 = vmatprep.subr.mxu0 0.0
      %762 = vmatpush2.msra.mxu0 0.0
      %763 = vmatprep.subr.mxu0 0.0
      %764 = vmatpush2.msra.mxu0 0.0
      %765 = vmatprep.subr.mxu0 0.0
      %766 = vmatpush2.msra.mxu0 0.0
      %767 = vmatprep.subr.mxu0 0.0
      %768 = vmatpush2.msra.mxu0 0.0
      %769 = vmatprep.subr.mxu0 0.0
      %770 = vmatpush2.msra.mxu0 0.0
      %771 = vmatprep.subr.mxu0 0.0
      %772 = vmatpush2.msra.mxu0 0.0
      %773 = vmatprep.subr.mxu0 0.0
      %774 = vmatpush2.msra.mxu0 0.0
      %775 = vmatprep.subr.mxu0 0.0
      %776 = vmatpush2.msra.mxu0 0.0
      %777 = vmatprep.subr.mxu0 0.0
      %778 = vmatpush2.msra.mxu0 0.0
      %779 = vmatprep.subr.mxu0 0.0
      %780 = vmatpush2.msra.mxu0 0.0
      %781 = vmatprep.subr.mxu0 0.0
      %782 = vmatpush2.msra.mxu0 0.0
      %783 = vmatprep.subr.mxu0 0.0
      %784 = vmatpush2.msra.mxu0 0.0
      %785 = vmatprep.subr.mxu0 0.0
      %786 = vmatpush2.msra.mxu0 0.0
      %787 = vmatprep.subr.mxu0 0.0
      %788 = vmatpush2.msra.mxu0 0.0
      %789 = vmatprep.subr.mxu0 0.0
      %790 = vmatpush2.msra.mxu0 0.0
      %791 = vmatprep.subr.mxu0 0.0
      %792 = vmatpush2.msra.mxu0 0.0
      %793 = vmatprep.mubr.f32.mxu0 0.0
      %794 = vmatmul.mubr.f32.gmra.mxu0 %v727
      %v795 = vpop.f32.mrf.mxu0
      %v796 = vadd.f32 0.0, %v795
      %v797 = vpop.f32.mrf.mxu0
      %v798 = vadd.f32 0.0, %v797
      %799 = vdwg.mxu0
      %800 = vrot.lane.b32.xlu0 %v796, 16
      %v801 = vpop.permute.xlu0 %800
      %802 = vrot.lane.b32.xlu0 %v798, 16
      %v803 = vpop.permute.xlu0 %802
      %v804 = vsel %vm283, %v801, %v803
      %v805 = vsel %vm283, %v803, %v801
      %v806 = vld [vmem:[%s286] ss:$8 sm:$0x3]
      %v808 = vlaneseq
      %v809 = vshrl.u32 %v808, 7
      %v810 = vsub.s32 0, %v809
      %v811 = vrot.slane %v806, %v810
      %v812 = vlaneseq
      %v813 = vshrl.u32 %v812, 7
      %v814 = vsub.s32 1, %v813
      %v815 = vrot.slane %v806, %v814
      %v818 = vmul.f32 %v811, %v805
      %v819 = vmul.f32 %v815, %v804
      %v820 = vadd.f32 %v722, %v818
      %v821 = vadd.f32 %v723, %v819
      %s822 = scalar_lea.vmem %s4, 16
      %v823 = vld [vmem:[%s822] sm:$0xff]
      %v825 = vsel %vm627, %v823, 0
      %827 = vmatprep.subr.mxu0 0.0
      %828 = vmatpush1.msra.mxu0 0.0
      %829 = vmatprep.subr.mxu0 0.0
      %830 = vmatpush1.msra.mxu0 0.0
      %831 = vmatprep.subr.mxu0 0.0
      %832 = vmatpush1.msra.mxu0 0.0
      %833 = vmatprep.subr.mxu0 0.0
      %834 = vmatpush1.msra.mxu0 0.0
      %835 = vmatprep.subr.mxu0 0.0
      %836 = vmatpush1.msra.mxu0 0.0
      %837 = vmatprep.subr.mxu0 0.0
      %838 = vmatpush1.msra.mxu0 0.0
      %839 = vmatprep.subr.mxu0 0.0
      %840 = vmatpush1.msra.mxu0 0.0
      %841 = vmatprep.subr.mxu0 0.0
      %842 = vmatpush1.msra.mxu0 0.0
      %843 = vmatprep.subr.mxu0 0.0
      %844 = vmatpush1.msra.mxu0 0.0
      %845 = vmatprep.subr.mxu0 0.0
      %846 = vmatpush1.msra.mxu0 0.0
      %847 = vmatprep.subr.mxu0 0.0
      %848 = vmatpush1.msra.mxu0 0.0
      %849 = vmatprep.subr.mxu0 0.0
      %850 = vmatpush1.msra.mxu0 0.0
      %851 = vmatprep.subr.mxu0 %v619
      %852 = vmatpush1.msra.mxu0 %v618
      %853 = vmatprep.subr.mxu0 %v617
      %854 = vmatpush1.msra.mxu0 %v616
      %855 = vmatprep.subr.mxu0 %v615
      %856 = vmatpush1.msra.mxu0 %v614
      %857 = vmatprep.subr.mxu0 %v613
      %858 = vmatpush1.msra.mxu0 %v612
      %859 = vmatprep.subr.mxu0 0.0
      %860 = vmatpush2.msra.mxu0 0.0
      %861 = vmatprep.subr.mxu0 0.0
      %862 = vmatpush2.msra.mxu0 0.0
      %863 = vmatprep.subr.mxu0 0.0
      %864 = vmatpush2.msra.mxu0 0.0
      %865 = vmatprep.subr.mxu0 0.0
      %866 = vmatpush2.msra.mxu0 0.0
      %867 = vmatprep.subr.mxu0 0.0
      %868 = vmatpush2.msra.mxu0 0.0
      %869 = vmatprep.subr.mxu0 0.0
      %870 = vmatpush2.msra.mxu0 0.0
      %871 = vmatprep.subr.mxu0 0.0
      %872 = vmatpush2.msra.mxu0 0.0
      %873 = vmatprep.subr.mxu0 0.0
      %874 = vmatpush2.msra.mxu0 0.0
      %875 = vmatprep.subr.mxu0 0.0
      %876 = vmatpush2.msra.mxu0 0.0
      %877 = vmatprep.subr.mxu0 0.0
      %878 = vmatpush2.msra.mxu0 0.0
      %879 = vmatprep.subr.mxu0 0.0
      %880 = vmatpush2.msra.mxu0 0.0
      %881 = vmatprep.subr.mxu0 0.0
      %882 = vmatpush2.msra.mxu0 0.0
      %883 = vmatprep.subr.mxu0 0.0
      %884 = vmatpush2.msra.mxu0 0.0
      %885 = vmatprep.subr.mxu0 0.0
      %886 = vmatpush2.msra.mxu0 0.0
      %887 = vmatprep.subr.mxu0 0.0
      %888 = vmatpush2.msra.mxu0 0.0
      %889 = vmatprep.subr.mxu0 0.0
      %890 = vmatpush2.msra.mxu0 0.0
      %891 = vmatprep.mubr.f32.mxu0 0.0
      %892 = vmatmul.mubr.f32.gmra.mxu0 %v825
      %v893 = vpop.f32.mrf.mxu0
      %v894 = vadd.f32 0.0, %v893
      %v895 = vpop.f32.mrf.mxu0
      %v896 = vadd.f32 0.0, %v895
      %897 = vdwg.mxu0
      %898 = vrot.lane.b32.xlu0 %v894, 15
      %v899 = vpop.permute.xlu0 %898
      %900 = vrot.lane.b32.xlu0 %v896, 15
      %v901 = vpop.permute.xlu0 %900
      %v902 = vsel %vm307, %v899, %v901
      %v903 = vsel %vm307, %v901, %v899
      %v904 = vld [vmem:[%s310] ss:$8 sm:$0x3]
      %v906 = vlaneseq
      %v907 = vshrl.u32 %v906, 7
      %v908 = vsub.s32 0, %v907
      %v909 = vrot.slane %v904, %v908
      %v910 = vlaneseq
      %v911 = vshrl.u32 %v910, 7
      %v912 = vsub.s32 1, %v911
      %v913 = vrot.slane %v904, %v912
      %v916 = vmul.f32 %v909, %v903
      %v917 = vmul.f32 %v913, %v902
      %v918 = vadd.f32 %v820, %v916
      %v919 = vadd.f32 %v821, %v917
      %s920 = scalar_lea.vmem %s4, 24
      %v921 = vld [vmem:[%s920] sm:$0xff]
      %v923 = vsel %vm627, %v921, 0
      %925 = vmatprep.subr.mxu0 0.0
      %926 = vmatpush1.msra.mxu0 0.0
      %927 = vmatprep.subr.mxu0 0.0
      %928 = vmatpush1.msra.mxu0 0.0
      %929 = vmatprep.subr.mxu0 0.0
      %930 = vmatpush1.msra.mxu0 0.0
      %931 = vmatprep.subr.mxu0 0.0
      %932 = vmatpush1.msra.mxu0 0.0
      %933 = vmatprep.subr.mxu0 0.0
      %934 = vmatpush1.msra.mxu0 0.0
      %935 = vmatprep.subr.mxu0 0.0
      %936 = vmatpush1.msra.mxu0 0.0
      %937 = vmatprep.subr.mxu0 0.0
      %938 = vmatpush1.msra.mxu0 0.0
      %939 = vmatprep.subr.mxu0 0.0
      %940 = vmatpush1.msra.mxu0 0.0
      %941 = vmatprep.subr.mxu0 0.0
      %942 = vmatpush1.msra.mxu0 0.0
      %943 = vmatprep.subr.mxu0 0.0
      %944 = vmatpush1.msra.mxu0 0.0
      %945 = vmatprep.subr.mxu0 0.0
      %946 = vmatpush1.msra.mxu0 0.0
      %947 = vmatprep.subr.mxu0 0.0
      %948 = vmatpush1.msra.mxu0 0.0
      %949 = vmatprep.subr.mxu0 %v619
      %950 = vmatpush1.msra.mxu0 %v618
      %951 = vmatprep.subr.mxu0 %v617
      %952 = vmatpush1.msra.mxu0 %v616
      %953 = vmatprep.subr.mxu0 %v615
      %954 = vmatpush1.msra.mxu0 %v614
      %955 = vmatprep.subr.mxu0 %v613
      %956 = vmatpush1.msra.mxu0 %v612
      %957 = vmatprep.subr.mxu0 0.0
      %958 = vmatpush2.msra.mxu0 0.0
      %959 = vmatprep.subr.mxu0 0.0
      %960 = vmatpush2.msra.mxu0 0.0
      %961 = vmatprep.subr.mxu0 0.0
      %962 = vmatpush2.msra.mxu0 0.0
      %963 = vmatprep.subr.mxu0 0.0
      %964 = vmatpush2.msra.mxu0 0.0
      %965 = vmatprep.subr.mxu0 0.0
      %966 = vmatpush2.msra.mxu0 0.0
      %967 = vmatprep.subr.mxu0 0.0
      %968 = vmatpush2.msra.mxu0 0.0
      %969 = vmatprep.subr.mxu0 0.0
      %970 = vmatpush2.msra.mxu0 0.0
      %971 = vmatprep.subr.mxu0 0.0
      %972 = vmatpush2.msra.mxu0 0.0
      %973 = vmatprep.subr.mxu0 0.0
      %974 = vmatpush2.msra.mxu0 0.0
      %975 = vmatprep.subr.mxu0 0.0
      %976 = vmatpush2.msra.mxu0 0.0
      %977 = vmatprep.subr.mxu0 0.0
      %978 = vmatpush2.msra.mxu0 0.0
      %979 = vmatprep.subr.mxu0 0.0
      %980 = vmatpush2.msra.mxu0 0.0
      %981 = vmatprep.subr.mxu0 0.0
      %982 = vmatpush2.msra.mxu0 0.0
      %983 = vmatprep.subr.mxu0 0.0
      %984 = vmatpush2.msra.mxu0 0.0
      %985 = vmatprep.subr.mxu0 0.0
      %986 = vmatpush2.msra.mxu0 0.0
      %987 = vmatprep.subr.mxu0 0.0
      %988 = vmatpush2.msra.mxu0 0.0
      %989 = vmatprep.mubr.f32.mxu0 0.0
      %990 = vmatmul.mubr.f32.gmra.mxu0 %v923
      %v991 = vpop.f32.mrf.mxu0
      %v992 = vadd.f32 0.0, %v991
      %v993 = vpop.f32.mrf.mxu0
      %v994 = vadd.f32 0.0, %v993
      %995 = vdwg.mxu0
      %996 = vrot.lane.b32.xlu0 %v992, 1
      %v997 = vpop.permute.xlu0 %996
      %998 = vrot.lane.b32.xlu0 %v994, 1
      %v999 = vpop.permute.xlu0 %998
      %v1000 = vsel %vm331, %v997, %v999
      %v1001 = vsel %vm331, %v999, %v997
      %v1002 = vld [vmem:[%s334] ss:$8 sm:$0x3]
      %v1004 = vlaneseq
      %v1005 = vshrl.u32 %v1004, 7
      %v1006 = vsub.s32 0, %v1005
      %v1007 = vrot.slane %v1002, %v1006
      %v1008 = vlaneseq
      %v1009 = vshrl.u32 %v1008, 7
      %v1010 = vsub.s32 1, %v1009
      %v1011 = vrot.slane %v1002, %v1010
      %v1014 = vmul.f32 %v1007, %v1001
      %v1015 = vmul.f32 %v1011, %v1000
      %v1016 = vadd.f32 %v918, %v1014
      %v1017 = vadd.f32 %v919, %v1015
      %s1018 = scalar_lea.vmem %s4, 32
      %v1019 = vld [vmem:[%s1018] sm:$0xff]
      %v1021 = vsel %vm627, %v1019, 0
      %1023 = vmatprep.subr.mxu0 0.0
      %1024 = vmatpush1.msra.mxu0 0.0
      %1025 = vmatprep.subr.mxu0 0.0
      %1026 = vmatpush1.msra.mxu0 0.0
      %1027 = vmatprep.subr.mxu0 0.0
      %1028 = vmatpush1.msra.mxu0 0.0
      %1029 = vmatprep.subr.mxu0 0.0
      %1030 = vmatpush1.msra.mxu0 0.0
      %1031 = vmatprep.subr.mxu0 0.0
      %1032 = vmatpush1.msra.mxu0 0.0
      %1033 = vmatprep.subr.mxu0 0.0
      %1034 = vmatpush1.msra.mxu0 0.0
      %1035 = vmatprep.subr.mxu0 0.0
      %1036 = vmatpush1.msra.mxu0 0.0
      %1037 = vmatprep.subr.mxu0 0.0
      %1038 = vmatpush1.msra.mxu0 0.0
      %1039 = vmatprep.subr.mxu0 0.0
      %1040 = vmatpush1.msra.mxu0 0.0
      %1041 = vmatprep.subr.mxu0 0.0
      %1042 = vmatpush1.msra.mxu0 0.0
      %1043 = vmatprep.subr.mxu0 0.0
      %1044 = vmatpush1.msra.mxu0 0.0
      %1045 = vmatprep.subr.mxu0 0.0
      %1046 = vmatpush1.msra.mxu0 0.0
      %1047 = vmatprep.subr.mxu0 %v619
      %1048 = vmatpush1.msra.mxu0 %v618
      %1049 = vmatprep.subr.mxu0 %v617
      %1050 = vmatpush1.msra.mxu0 %v616
      %1051 = vmatprep.subr.mxu0 %v615
      %1052 = vmatpush1.msra.mxu0 %v614
      %1053 = vmatprep.subr.mxu0 %v613
      %1054 = vmatpush1.msra.mxu0 %v612
      %1055 = vmatprep.subr.mxu0 0.0
      %1056 = vmatpush2.msra.mxu0 0.0
      %1057 = vmatprep.subr.mxu0 0.0
      %1058 = vmatpush2.msra.mxu0 0.0
      %1059 = vmatprep.subr.mxu0 0.0
      %1060 = vmatpush2.msra.mxu0 0.0
      %1061 = vmatprep.subr.mxu0 0.0
      %1062 = vmatpush2.msra.mxu0 0.0
      %1063 = vmatprep.subr.mxu0 0.0
      %1064 = vmatpush2.msra.mxu0 0.0
      %1065 = vmatprep.subr.mxu0 0.0
      %1066 = vmatpush2.msra.mxu0 0.0
      %1067 = vmatprep.subr.mxu0 0.0
      %1068 = vmatpush2.msra.mxu0 0.0
      %1069 = vmatprep.subr.mxu0 0.0
      %1070 = vmatpush2.msra.mxu0 0.0
      %1071 = vmatprep.subr.mxu0 0.0
      %1072 = vmatpush2.msra.mxu0 0.0
      %1073 = vmatprep.subr.mxu0 0.0
      %1074 = vmatpush2.msra.mxu0 0.0
      %1075 = vmatprep.subr.mxu0 0.0
      %1076 = vmatpush2.msra.mxu0 0.0
      %1077 = vmatprep.subr.mxu0 0.0
      %1078 = vmatpush2.msra.mxu0 0.0
      %1079 = vmatprep.subr.mxu0 0.0
      %1080 = vmatpush2.msra.mxu0 0.0
      %1081 = vmatprep.subr.mxu0 0.0
      %1082 = vmatpush2.msra.mxu0 0.0
      %1083 = vmatprep.subr.mxu0 0.0
      %1084 = vmatpush2.msra.mxu0 0.0
      %1085 = vmatprep.subr.mxu0 0.0
      %1086 = vmatpush2.msra.mxu0 0.0
      %1087 = vmatprep.mubr.f32.mxu0 0.0
      %1088 = vmatmul.mubr.f32.gmra.mxu0 %v1021
      %v1089 = vpop.f32.mrf.mxu0
      %v1090 = vadd.f32 0.0, %v1089
      %v1091 = vpop.f32.mrf.mxu0
      %v1092 = vadd.f32 0.0, %v1091
      %1093 = vdwg.mxu0
      %v1094 = vld [vmem:[%s351] ss:$8 sm:$0x3]
      %v1096 = vlaneseq
      %v1097 = vshrl.u32 %v1096, 7
      %v1098 = vsub.s32 0, %v1097
      %v1099 = vrot.slane %v1094, %v1098
      %v1100 = vlaneseq
      %v1101 = vshrl.u32 %v1100, 7
      %v1102 = vsub.s32 1, %v1101
      %v1103 = vrot.slane %v1094, %v1102
      %v1106 = vmul.f32 %v1099, %v1090
      %v1107 = vmul.f32 %v1103, %v1092
      %v1108 = vadd.f32 %v1016, %v1106
      %v1109 = vadd.f32 %v1017, %v1107
      %s1110 = scalar_lea.vmem %s4, 40
      %v1111 = vld [vmem:[%s1110] sm:$0xff]
      %v1113 = vsel %vm627, %v1111, 0
      %1115 = vmatprep.subr.mxu0 0.0
      %1116 = vmatpush1.msra.mxu0 0.0
      %1117 = vmatprep.subr.mxu0 0.0
      %1118 = vmatpush1.msra.mxu0 0.0
      %1119 = vmatprep.subr.mxu0 0.0
      %1120 = vmatpush1.msra.mxu0 0.0
      %1121 = vmatprep.subr.mxu0 0.0
      %1122 = vmatpush1.msra.mxu0 0.0
      %1123 = vmatprep.subr.mxu0 0.0
      %1124 = vmatpush1.msra.mxu0 0.0
      %1125 = vmatprep.subr.mxu0 0.0
      %1126 = vmatpush1.msra.mxu0 0.0
      %1127 = vmatprep.subr.mxu0 0.0
      %1128 = vmatpush1.msra.mxu0 0.0
      %1129 = vmatprep.subr.mxu0 0.0
      %1130 = vmatpush1.msra.mxu0 0.0
      %1131 = vmatprep.subr.mxu0 0.0
      %1132 = vmatpush1.msra.mxu0 0.0
      %1133 = vmatprep.subr.mxu0 0.0
      %1134 = vmatpush1.msra.mxu0 0.0
      %1135 = vmatprep.subr.mxu0 0.0
      %1136 = vmatpush1.msra.mxu0 0.0
      %1137 = vmatprep.subr.mxu0 0.0
      %1138 = vmatpush1.msra.mxu0 0.0
      %1139 = vmatprep.subr.mxu0 %v619
      %1140 = vmatpush1.msra.mxu0 %v618
      %1141 = vmatprep.subr.mxu0 %v617
      %1142 = vmatpush1.msra.mxu0 %v616
      %1143 = vmatprep.subr.mxu0 %v615
      %1144 = vmatpush1.msra.mxu0 %v614
      %1145 = vmatprep.subr.mxu0 %v613
      %1146 = vmatpush1.msra.mxu0 %v612
      %1147 = vmatprep.subr.mxu0 0.0
      %1148 = vmatpush2.msra.mxu0 0.0
      %1149 = vmatprep.subr.mxu0 0.0
      %1150 = vmatpush2.msra.mxu0 0.0
      %1151 = vmatprep.subr.mxu0 0.0
      %1152 = vmatpush2.msra.mxu0 0.0
      %1153 = vmatprep.subr.mxu0 0.0
      %1154 = vmatpush2.msra.mxu0 0.0
      %1155 = vmatprep.subr.mxu0 0.0
      %1156 = vmatpush2.msra.mxu0 0.0
      %1157 = vmatprep.subr.mxu0 0.0
      %1158 = vmatpush2.msra.mxu0 0.0
      %1159 = vmatprep.subr.mxu0 0.0
      %1160 = vmatpush2.msra.mxu0 0.0
      %1161 = vmatprep.subr.mxu0 0.0
      %1162 = vmatpush2.msra.mxu0 0.0
      %1163 = vmatprep.subr.mxu0 0.0
      %1164 = vmatpush2.msra.mxu0 0.0
      %1165 = vmatprep.subr.mxu0 0.0
      %1166 = vmatpush2.msra.mxu0 0.0
      %1167 = vmatprep.subr.mxu0 0.0
      %1168 = vmatpush2.msra.mxu0 0.0
      %1169 = vmatprep.subr.mxu0 0.0
      %1170 = vmatpush2.msra.mxu0 0.0
      %1171 = vmatprep.subr.mxu0 0.0
      %1172 = vmatpush2.msra.mxu0 0.0
      %1173 = vmatprep.subr.mxu0 0.0
      %1174 = vmatpush2.msra.mxu0 0.0
      %1175 = vmatprep.subr.mxu0 0.0
      %1176 = vmatpush2.msra.mxu0 0.0
      %1177 = vmatprep.subr.mxu0 0.0
      %1178 = vmatpush2.msra.mxu0 0.0
      %1179 = vmatprep.mubr.f32.mxu0 0.0
      %1180 = vmatmul.mubr.f32.gmra.mxu0 %v1113
      %v1181 = vpop.f32.mrf.mxu0
      %v1182 = vadd.f32 0.0, %v1181
      %v1183 = vpop.f32.mrf.mxu0
      %v1184 = vadd.f32 0.0, %v1183
      %1185 = vdwg.mxu0
      %1186 = vrot.lane.b32.xlu0 %v1182, 127
      %v1187 = vpop.permute.xlu0 %1186
      %1188 = vrot.lane.b32.xlu0 %v1184, 127
      %v1189 = vpop.permute.xlu0 %1188
      %v1190 = vsel %vm372, %v1187, %v1189
      %v1191 = vsel %vm372, %v1189, %v1187
      %v1192 = vld [vmem:[%s375] ss:$8 sm:$0x3]
      %v1194 = vlaneseq
      %v1195 = vshrl.u32 %v1194, 7
      %v1196 = vsub.s32 0, %v1195
      %v1197 = vrot.slane %v1192, %v1196
      %v1198 = vlaneseq
      %v1199 = vshrl.u32 %v1198, 7
      %v1200 = vsub.s32 1, %v1199
      %v1201 = vrot.slane %v1192, %v1200
      %v1204 = vmul.f32 %v1197, %v1190
      %v1205 = vmul.f32 %v1201, %v1191
      %v1206 = vadd.f32 %v1108, %v1204
      %v1207 = vadd.f32 %v1109, %v1205
      %s1208 = scalar_lea.vmem %s4, 48
      %v1209 = vld [vmem:[%s1208] sm:$0xff]
      %v1211 = vsel %vm627, %v1209, 0
      %1213 = vmatprep.subr.mxu0 0.0
      %1214 = vmatpush1.msra.mxu0 0.0
      %1215 = vmatprep.subr.mxu0 0.0
      %1216 = vmatpush1.msra.mxu0 0.0
      %1217 = vmatprep.subr.mxu0 0.0
      %1218 = vmatpush1.msra.mxu0 0.0
      %1219 = vmatprep.subr.mxu0 0.0
      %1220 = vmatpush1.msra.mxu0 0.0
      %1221 = vmatprep.subr.mxu0 0.0
      %1222 = vmatpush1.msra.mxu0 0.0
      %1223 = vmatprep.subr.mxu0 0.0
      %1224 = vmatpush1.msra.mxu0 0.0
      %1225 = vmatprep.subr.mxu0 0.0
      %1226 = vmatpush1.msra.mxu0 0.0
      %1227 = vmatprep.subr.mxu0 0.0
      %1228 = vmatpush1.msra.mxu0 0.0
      %1229 = vmatprep.subr.mxu0 0.0
      %1230 = vmatpush1.msra.mxu0 0.0
      %1231 = vmatprep.subr.mxu0 0.0
      %1232 = vmatpush1.msra.mxu0 0.0
      %1233 = vmatprep.subr.mxu0 0.0
      %1234 = vmatpush1.msra.mxu0 0.0
      %1235 = vmatprep.subr.mxu0 0.0
      %1236 = vmatpush1.msra.mxu0 0.0
      %1237 = vmatprep.subr.mxu0 %v619
      %1238 = vmatpush1.msra.mxu0 %v618
      %1239 = vmatprep.subr.mxu0 %v617
      %1240 = vmatpush1.msra.mxu0 %v616
      %1241 = vmatprep.subr.mxu0 %v615
      %1242 = vmatpush1.msra.mxu0 %v614
      %1243 = vmatprep.subr.mxu0 %v613
      %1244 = vmatpush1.msra.mxu0 %v612
      %1245 = vmatprep.subr.mxu0 0.0
      %1246 = vmatpush2.msra.mxu0 0.0
      %1247 = vmatprep.subr.mxu0 0.0
      %1248 = vmatpush2.msra.mxu0 0.0
      %1249 = vmatprep.subr.mxu0 0.0
      %1250 = vmatpush2.msra.mxu0 0.0
      %1251 = vmatprep.subr.mxu0 0.0
      %1252 = vmatpush2.msra.mxu0 0.0
      %1253 = vmatprep.subr.mxu0 0.0
      %1254 = vmatpush2.msra.mxu0 0.0
      %1255 = vmatprep.subr.mxu0 0.0
      %1256 = vmatpush2.msra.mxu0 0.0
      %1257 = vmatprep.subr.mxu0 0.0
      %1258 = vmatpush2.msra.mxu0 0.0
      %1259 = vmatprep.subr.mxu0 0.0
      %1260 = vmatpush2.msra.mxu0 0.0
      %1261 = vmatprep.subr.mxu0 0.0
      %1262 = vmatpush2.msra.mxu0 0.0
      %1263 = vmatprep.subr.mxu0 0.0
      %1264 = vmatpush2.msra.mxu0 0.0
      %1265 = vmatprep.subr.mxu0 0.0
      %1266 = vmatpush2.msra.mxu0 0.0
      %1267 = vmatprep.subr.mxu0 0.0
      %1268 = vmatpush2.msra.mxu0 0.0
      %1269 = vmatprep.subr.mxu0 0.0
      %1270 = vmatpush2.msra.mxu0 0.0
      %1271 = vmatprep.subr.mxu0 0.0
      %1272 = vmatpush2.msra.mxu0 0.0
      %1273 = vmatprep.subr.mxu0 0.0
      %1274 = vmatpush2.msra.mxu0 0.0
      %1275 = vmatprep.subr.mxu0 0.0
      %1276 = vmatpush2.msra.mxu0 0.0
      %1277 = vmatprep.mubr.f32.mxu0 0.0
      %1278 = vmatmul.mubr.f32.gmra.mxu0 %v1211
      %v1279 = vpop.f32.mrf.mxu0
      %v1280 = vadd.f32 0.0, %v1279
      %v1281 = vpop.f32.mrf.mxu0
      %v1282 = vadd.f32 0.0, %v1281
      %1283 = vdwg.mxu0
      %1284 = vrot.lane.b32.xlu0 %v1280, 113
      %v1285 = vpop.permute.xlu0 %1284
      %1286 = vrot.lane.b32.xlu0 %v1282, 113
      %v1287 = vpop.permute.xlu0 %1286
      %v1288 = vsel %vm396, %v1285, %v1287
      %v1289 = vsel %vm396, %v1287, %v1285
      %v1290 = vld [vmem:[%s399] ss:$8 sm:$0x3]
      %v1292 = vlaneseq
      %v1293 = vshrl.u32 %v1292, 7
      %v1294 = vsub.s32 0, %v1293
      %v1295 = vrot.slane %v1290, %v1294
      %v1296 = vlaneseq
      %v1297 = vshrl.u32 %v1296, 7
      %v1298 = vsub.s32 1, %v1297
      %v1299 = vrot.slane %v1290, %v1298
      %v1302 = vmul.f32 %v1295, %v1288
      %v1303 = vmul.f32 %v1299, %v1289
      %v1304 = vadd.f32 %v1206, %v1302
      %v1305 = vadd.f32 %v1207, %v1303
      %s1306 = scalar_lea.vmem %s4, 56
      %v1307 = vld [vmem:[%s1306] sm:$0xff]
      %v1309 = vsel %vm627, %v1307, 0
      %1311 = vmatprep.subr.mxu0 0.0
      %1312 = vmatpush1.msra.mxu0 0.0
      %1313 = vmatprep.subr.mxu0 0.0
      %1314 = vmatpush1.msra.mxu0 0.0
      %1315 = vmatprep.subr.mxu0 0.0
      %1316 = vmatpush1.msra.mxu0 0.0
      %1317 = vmatprep.subr.mxu0 0.0
      %1318 = vmatpush1.msra.mxu0 0.0
      %1319 = vmatprep.subr.mxu0 0.0
      %1320 = vmatpush1.msra.mxu0 0.0
      %1321 = vmatprep.subr.mxu0 0.0
      %1322 = vmatpush1.msra.mxu0 0.0
      %1323 = vmatprep.subr.mxu0 0.0
      %1324 = vmatpush1.msra.mxu0 0.0
      %1325 = vmatprep.subr.mxu0 0.0
      %1326 = vmatpush1.msra.mxu0 0.0
      %1327 = vmatprep.subr.mxu0 0.0
      %1328 = vmatpush1.msra.mxu0 0.0
      %1329 = vmatprep.subr.mxu0 0.0
      %1330 = vmatpush1.msra.mxu0 0.0
      %1331 = vmatprep.subr.mxu0 0.0
      %1332 = vmatpush1.msra.mxu0 0.0
      %1333 = vmatprep.subr.mxu0 0.0
      %1334 = vmatpush1.msra.mxu0 0.0
      %1335 = vmatprep.subr.mxu0 %v619
      %1336 = vmatpush1.msra.mxu0 %v618
      %1337 = vmatprep.subr.mxu0 %v617
      %1338 = vmatpush1.msra.mxu0 %v616
      %1339 = vmatprep.subr.mxu0 %v615
      %1340 = vmatpush1.msra.mxu0 %v614
      %1341 = vmatprep.subr.mxu0 %v613
      %1342 = vmatpush1.msra.mxu0 %v612
      %1343 = vmatprep.subr.mxu0 0.0
      %1344 = vmatpush2.msra.mxu0 0.0
      %1345 = vmatprep.subr.mxu0 0.0
      %1346 = vmatpush2.msra.mxu0 0.0
      %1347 = vmatprep.subr.mxu0 0.0
      %1348 = vmatpush2.msra.mxu0 0.0
      %1349 = vmatprep.subr.mxu0 0.0
      %1350 = vmatpush2.msra.mxu0 0.0
      %1351 = vmatprep.subr.mxu0 0.0
      %1352 = vmatpush2.msra.mxu0 0.0
      %1353 = vmatprep.subr.mxu0 0.0
      %1354 = vmatpush2.msra.mxu0 0.0
      %1355 = vmatprep.subr.mxu0 0.0
      %1356 = vmatpush2.msra.mxu0 0.0
      %1357 = vmatprep.subr.mxu0 0.0
      %1358 = vmatpush2.msra.mxu0 0.0
      %1359 = vmatprep.subr.mxu0 0.0
      %1360 = vmatpush2.msra.mxu0 0.0
      %1361 = vmatprep.subr.mxu0 0.0
      %1362 = vmatpush2.msra.mxu0 0.0
      %1363 = vmatprep.subr.mxu0 0.0
      %1364 = vmatpush2.msra.mxu0 0.0
      %1365 = vmatprep.subr.mxu0 0.0
      %1366 = vmatpush2.msra.mxu0 0.0
      %1367 = vmatprep.subr.mxu0 0.0
      %1368 = vmatpush2.msra.mxu0 0.0
      %1369 = vmatprep.subr.mxu0 0.0
      %1370 = vmatpush2.msra.mxu0 0.0
      %1371 = vmatprep.subr.mxu0 0.0
      %1372 = vmatpush2.msra.mxu0 0.0
      %1373 = vmatprep.subr.mxu0 0.0
      %1374 = vmatpush2.msra.mxu0 0.0
      %1375 = vmatprep.mubr.f32.mxu0 0.0
      %1376 = vmatmul.mubr.f32.gmra.mxu0 %v1309
      %v1377 = vpop.f32.mrf.mxu0
      %v1378 = vadd.f32 0.0, %v1377
      %v1379 = vpop.f32.mrf.mxu0
      %v1380 = vadd.f32 0.0, %v1379
      %1381 = vdwg.mxu0
      %1382 = vrot.lane.b32.xlu0 %v1378, 112
      %v1383 = vpop.permute.xlu0 %1382
      %1384 = vrot.lane.b32.xlu0 %v1380, 112
      %v1385 = vpop.permute.xlu0 %1384
      %v1386 = vsel %vm420, %v1383, %v1385
      %v1387 = vsel %vm420, %v1385, %v1383
      %v1388 = vld [vmem:[%s423] ss:$8 sm:$0x3]
      %v1390 = vlaneseq
      %v1391 = vshrl.u32 %v1390, 7
      %v1392 = vsub.s32 0, %v1391
      %v1393 = vrot.slane %v1388, %v1392
      %v1394 = vlaneseq
      %v1395 = vshrl.u32 %v1394, 7
      %v1396 = vsub.s32 1, %v1395
      %v1397 = vrot.slane %v1388, %v1396
      %v1400 = vmul.f32 %v1393, %v1386
      %v1401 = vmul.f32 %v1397, %v1387
      %v1402 = vadd.f32 %v1304, %v1400
      %v1403 = vadd.f32 %v1305, %v1401
      %s1404 = scalar_lea.vmem %s4, 64
      %v1405 = vld [vmem:[%s1404] sm:$0xff]
      %v1407 = vsel %vm627, %v1405, 0
      %1409 = vmatprep.subr.mxu0 0.0
      %1410 = vmatpush1.msra.mxu0 0.0
      %1411 = vmatprep.subr.mxu0 0.0
      %1412 = vmatpush1.msra.mxu0 0.0
      %1413 = vmatprep.subr.mxu0 0.0
      %1414 = vmatpush1.msra.mxu0 0.0
      %1415 = vmatprep.subr.mxu0 0.0
      %1416 = vmatpush1.msra.mxu0 0.0
      %1417 = vmatprep.subr.mxu0 0.0
      %1418 = vmatpush1.msra.mxu0 0.0
      %1419 = vmatprep.subr.mxu0 0.0
      %1420 = vmatpush1.msra.mxu0 0.0
      %1421 = vmatprep.subr.mxu0 0.0
      %1422 = vmatpush1.msra.mxu0 0.0
      %1423 = vmatprep.subr.mxu0 0.0
      %1424 = vmatpush1.msra.mxu0 0.0
      %1425 = vmatprep.subr.mxu0 0.0
      %1426 = vmatpush1.msra.mxu0 0.0
      %1427 = vmatprep.subr.mxu0 0.0
      %1428 = vmatpush1.msra.mxu0 0.0
      %1429 = vmatprep.subr.mxu0 0.0
      %1430 = vmatpush1.msra.mxu0 0.0
      %1431 = vmatprep.subr.mxu0 0.0
      %1432 = vmatpush1.msra.mxu0 0.0
      %1433 = vmatprep.subr.mxu0 %v619
      %1434 = vmatpush1.msra.mxu0 %v618
      %1435 = vmatprep.subr.mxu0 %v617
      %1436 = vmatpush1.msra.mxu0 %v616
      %1437 = vmatprep.subr.mxu0 %v615
      %1438 = vmatpush1.msra.mxu0 %v614
      %1439 = vmatprep.subr.mxu0 %v613
      %1440 = vmatpush1.msra.mxu0 %v612
      %1441 = vmatprep.subr.mxu0 0.0
      %1442 = vmatpush2.msra.mxu0 0.0
      %1443 = vmatprep.subr.mxu0 0.0
      %1444 = vmatpush2.msra.mxu0 0.0
      %1445 = vmatprep.subr.mxu0 0.0
      %1446 = vmatpush2.msra.mxu0 0.0
      %1447 = vmatprep.subr.mxu0 0.0
      %1448 = vmatpush2.msra.mxu0 0.0
      %1449 = vmatprep.subr.mxu0 0.0
      %1450 = vmatpush2.msra.mxu0 0.0
      %1451 = vmatprep.subr.mxu0 0.0
      %1452 = vmatpush2.msra.mxu0 0.0
      %1453 = vmatprep.subr.mxu0 0.0
      %1454 = vmatpush2.msra.mxu0 0.0
      %1455 = vmatprep.subr.mxu0 0.0
      %1456 = vmatpush2.msra.mxu0 0.0
      %1457 = vmatprep.subr.mxu0 0.0
      %1458 = vmatpush2.msra.mxu0 0.0
      %1459 = vmatprep.subr.mxu0 0.0
      %1460 = vmatpush2.msra.mxu0 0.0
      %1461 = vmatprep.subr.mxu0 0.0
      %1462 = vmatpush2.msra.mxu0 0.0
      %1463 = vmatprep.subr.mxu0 0.0
      %1464 = vmatpush2.msra.mxu0 0.0
      %1465 = vmatprep.subr.mxu0 0.0
      %1466 = vmatpush2.msra.mxu0 0.0
      %1467 = vmatprep.subr.mxu0 0.0
      %1468 = vmatpush2.msra.mxu0 0.0
      %1469 = vmatprep.subr.mxu0 0.0
      %1470 = vmatpush2.msra.mxu0 0.0
      %1471 = vmatprep.subr.mxu0 0.0
      %1472 = vmatpush2.msra.mxu0 0.0
      %1473 = vmatprep.mubr.f32.mxu0 0.0
      %1474 = vmatmul.mubr.f32.gmra.mxu0 %v1407
      %v1475 = vpop.f32.mrf.mxu0
      %v1476 = vadd.f32 0.0, %v1475
      %v1477 = vpop.f32.mrf.mxu0
      %v1478 = vadd.f32 0.0, %v1477
      %1479 = vdwg.mxu0
      %1480 = vrot.lane.b32.xlu0 %v1476, 111
      %v1481 = vpop.permute.xlu0 %1480
      %1482 = vrot.lane.b32.xlu0 %v1478, 111
      %v1483 = vpop.permute.xlu0 %1482
      %v1484 = vsel %vm444, %v1481, %v1483
      %v1485 = vsel %vm444, %v1483, %v1481
      %v1486 = vld [vmem:[%s447] ss:$8 sm:$0x3]
      %v1488 = vlaneseq
      %v1489 = vshrl.u32 %v1488, 7
      %v1490 = vsub.s32 0, %v1489
      %v1491 = vrot.slane %v1486, %v1490
      %v1492 = vlaneseq
      %v1493 = vshrl.u32 %v1492, 7
      %v1494 = vsub.s32 1, %v1493
      %v1495 = vrot.slane %v1486, %v1494
      %v1498 = vmul.f32 %v1491, %v1484
      %v1499 = vmul.f32 %v1495, %v1485
      %v1500 = vadd.f32 %v1402, %v1498
      %v1501 = vadd.f32 %v1403, %v1499
      %v1504 = vcombine.low %v1500, %v1501
      %v1506 = vunpack.c.l.s4 1983009808
      %v1507 = vunpack.c.0.s8 %v1506
      %v1508 = vlaneseq
      %v1509 = vshrl.u32 %v1508, 7
      %v1510 = vsub.s32 %v1507, %v1509
      %v1511 = vrot.slane %v1504, %v1510
      %1513 = vst [vmem:[%s251] sm:$0xf] %v1511
      %p1514 = scmp.lt.s32.totalorder %s17, 1
      %s1515 = scalar_select %p1514, %s17, 1
      %s1516 = smul.addr %s1515, 2
      %s1517 = smul.addr %s1516, 2
      %s1518 = scalar_lea.vmem %s6, %s1517
      // Predicated region
      $region45: #{_flow_head_impl.1} parent=43 // pred_check
        %p1519 = pneg %p166
      $region46: #{_flow_head_impl.1} parent=43 // pred_check_branch
        %1521 = sbr.rel (%p1519) target = $region48
      $region47: #{_flow_head_impl.1} parent=43 // pred_region
        _
      $region48: #{_flow_head_impl.1} parent=43 // pred_fallthru
        _
    $region44: #{_flow_head_impl.1} parent=5 // pred_fallthru
      _
    %p1522 = scmp.le.s32.totalorder 2, %s12
    // Predicated region
    $region49: #{_flow_head_impl.1} parent=5 // pred_check
      %p1523 = pneg %p1522
    $region50: #{_flow_head_impl.1} parent=5 // pred_check_branch
      %1525 = sbr.rel (%p1523) target = $region52
    $region51: #{_flow_head_impl.1} parent=5 // pred_region
      %s1526 = ssub.s32 %s12, 2
      // Predicated region
      $region53: #{_flow_head_impl.1} parent=51 // pred_check
        %p1527 = pneg %p172
      $region54: #{_flow_head_impl.1} parent=51 // pred_check_branch
        %1529 = sbr.rel (%p1527) target = $region56
      $region55: #{_flow_head_impl.1} parent=51 // pred_region
        %p1530 = scmp.lt.s32.totalorder %s18, 1
        %s1531 = scalar_select %p1530, %s18, 1
        %s1532 = smul.addr %s1531, 2
        %s1533 = smul.addr %s1532, 2
        %s1534 = scalar_lea.vmem %s6, %s1533
      $region56: #{_flow_head_impl.1} parent=51 // pred_fallthru
        _
    $region52: #{_flow_head_impl.1} parent=5 // pred_fallthru
      _
  $region6: #{_flow_head_impl.1} parent=0 // loop_footer
    %s16 = sadd.s32 1, %s12
  $region7: #{_flow_head_impl.1} parent=0 // loop_footer_branch
    %11 = sbr.rel target = $region3
  $region8: #{_flow_head_impl.1} parent=0 // loop_exit
    _

</llo_original>
